<compile_context>
chip_gen: v6e
topology: v6e:2x2x1
jax: 0.10.0
libtpu: 0.0.40
codegen_flags: <defaults>
</compile_context>

<pallas_src>
import jax
import jax.numpy as jnp
from jax import lax
from jax.experimental import pallas as pl
from jax.experimental.pallas import tpu as pltpu

IN_DIM = 2048
HIDDEN = 1000
HIDDEN_PAD = 1024            # multiple of 128 -> exact TN tiling, no ragged tail
NUM_CLASSES = 3              # domain == 'eth_labels'
C_PAD = 128                  # pad class dim to a full lane group (unmasked stores)
NORM_EPS = 1e-12             # torch.nn.functional.normalize default eps
TN = 256                     # HIDDEN tile: streams W1 in 2048x256 bf16 (1 MiB) chunks


def dense_nn_kernel(x_ref, w1_ref, b1_ref, w2_ref, b2_ref, o_ref, xn_ref):
    """Grid = (batch tiles, HIDDEN_PAD // TN).  o_ref accumulates over the n axis."""
    n = pl.program_id(1)

    @pl.when(n == 0)
    def _init():
        # F.normalize(x, p=2, dim=1): x / max(||x||, eps) == x * rsqrt(max(||x||^2, eps^2))
        x = x_ref[...]                                              # (TB, 2048) f32
        sq = jnp.sum(x * x, axis=-1, keepdims=True)                 # (TB, 1)
        inv = lax.rsqrt(jnp.maximum(sq, NORM_EPS * NORM_EPS))
        xn_ref[...] = (x * inv).astype(jnp.bfloat16)                # bf16 for the MXU
        o_ref[...] = jnp.zeros_like(o_ref)

    # layer 1 tile: (TB, 2048) bf16 @ (2048, TN) bf16 -> f32, + bias, ReLU
    h = jnp.dot(xn_ref[...], w1_ref[...], preferred_element_type=jnp.float32)
    h = jnp.maximum(h + b1_ref[...], 0.0)                           # (TB, TN)

    # layer 2 partial product accumulated into the resident lane-dense output block
    o_ref[...] += jnp.dot(h, w2_ref[...], preferred_element_type=jnp.float32)

    @pl.when(n == pl.num_programs(1) - 1)
    def _finalize():
        o_ref[...] += b2_ref[...]


def prepare_params(w1, b1, w2, b2):
    """One-time weight preprocessing: pad HIDDEN->1024, classes->128, W1 -> bf16."""
    w1p = jnp.zeros((IN_DIM, HIDDEN_PAD), jnp.bfloat16)
    w1p = w1p.at[:, :HIDDEN].set(w1.astype(jnp.bfloat16))
    b1p = jnp.zeros((1, HIDDEN_PAD), jnp.float32).at[:, :HIDDEN].set(b1.reshape(1, -1))
    w2p = jnp.zeros((HIDDEN_PAD, C_PAD), jnp.float32).at[:HIDDEN, :NUM_CLASSES].set(w2)
    b2p = jnp.zeros((1, C_PAD), jnp.float32).at[:, :NUM_CLASSES].set(b2.reshape(1, -1))
    return w1p, b1p, w2p, b2p


def dense_nn_forward(x, w1p, b1p, w2p, b2p):
    B = x.shape[0]
    TB = min(128, pl.cdiv(B, 8) * 8)          # batch tile, multiple of 8 sublanes
    B_pad = pl.cdiv(B, TB) * TB
    if B_pad != B:
        x = jnp.pad(x, ((0, B_pad - B), (0, 0)))   # zero rows are safe (no NaN)

    grid = (B_pad // TB, HIDDEN_PAD // TN)

    out = pl.pallas_call(
        dense_nn_kernel,
        out_shape=jax.ShapeDtypeStruct((B_pad, C_PAD), jnp.float32),
        grid_spec=pltpu.PrefetchScalarGridSpec(
            num_scalar_prefetch=0,
            grid=grid,
            in_specs=[
                pl.BlockSpec((TB, IN_DIM), lambda b, n: (b, 0)),    # x: resident across n
                pl.BlockSpec((IN_DIM, TN), lambda b, n: (0, n)),    # W1 tile (bf16, streamed)
                pl.BlockSpec((1, TN),      lambda b, n: (0, n)),    # b1 tile
                pl.BlockSpec((TN, C_PAD),  lambda b, n: (n, 0)),    # W2 tile
                pl.BlockSpec((1, C_PAD),   lambda b, n: (0, 0)),    # b2
            ],
            out_specs=pl.BlockSpec((TB, C_PAD), lambda b, n: (b, 0)),  # accumulator
            scratch_shapes=[pltpu.VMEM((TB, IN_DIM), jnp.bfloat16)],   # normalized x
        ),
        compiler_params=pltpu.CompilerParams(
            dimension_semantics=("parallel", "arbitrary"),
            vmem_limit_bytes=32 << 20,
        ),
    )(x, w1p, b1p, w2p, b2p)

    return out[:B, :NUM_CLASSES]


def init_params(key):
    # Deterministic synthetic init (PyTorch-like uniform fan-in scaling).
    k1, k2, k3, k4 = jax.random.split(key, 4)
    lim1 = 1.0 / jnp.sqrt(IN_DIM)
    lim2 = 1.0 / jnp.sqrt(HIDDEN)
    # stored transposed relative to nn.Linear: (in_features, out_features)
    w1 = jax.random.uniform(k1, (IN_DIM, HIDDEN), jnp.float32, -lim1, lim1)
    b1 = jax.random.uniform(k2, (HIDDEN,), jnp.float32, -lim1, lim1)
    w2 = jax.random.uniform(k3, (HIDDEN, NUM_CLASSES), jnp.float32, -lim2, lim2)
    b2 = jax.random.uniform(k4, (NUM_CLASSES,), jnp.float32, -lim2, lim2)
    return w1, b1, w2, b2


def reference_forward_f32(x, w1, b1, w2, b2):
    # Exact PyTorch semantics in f32.
    norm = jnp.sqrt(jnp.sum(x * x, axis=-1, keepdims=True))
    xn = x / jnp.maximum(norm, NORM_EPS)
    h = jnp.maximum(xn @ w1 + b1.reshape(1, -1), 0.0)
    return h @ w2 + b2.reshape(1, -1)


def reference_forward_bf16(x, w1, b1, w2, b2):
    # Matches the kernel's numerics: bf16 layer-1 operands, f32 accumulation.
    sq = jnp.sum(x * x, axis=-1, keepdims=True)
    xn = (x * lax.rsqrt(jnp.maximum(sq, NORM_EPS * NORM_EPS))).astype(jnp.bfloat16)
    h = jnp.dot(xn, w1.astype(jnp.bfloat16), preferred_element_type=jnp.float32)
    h = jnp.maximum(h + b1.reshape(1, -1), 0.0)
    return jnp.dot(h, w2, preferred_element_type=jnp.float32) + b2.reshape(1, -1)


if __name__ == "__main__":
    key = jax.random.PRNGKey(0)
    kx, kp = jax.random.split(key)

    B = 8
    x = jax.random.normal(kx, (B, IN_DIM), jnp.float32)
    w1, b1, w2, b2 = init_params(kp)
    w1p, b1p, w2p, b2p = prepare_params(w1, b1, w2, b2)

    out = dense_nn_forward(x, w1p, b1p, w2p, b2p)
    out = jax.block_until_ready(out)
    assert out.shape == (B, NUM_CLASSES)

    ref_bf16 = reference_forward_bf16(x, w1, b1, w2, b2)   # kernel-precision reference
    ref_f32 = reference_forward_f32(x, w1, b1, w2, b2)     # full-f32 module semantics
    assert jnp.allclose(out, ref_bf16, atol=1e-4, rtol=1e-4), "mismatch vs bf16-matched ref"
    assert jnp.allclose(out, ref_f32, atol=2e-2, rtol=2e-2), "mismatch vs f32 reference"

    print("KERNEL_OK")
</pallas_src>

<mosaic_0001>
module attributes {stable_mosaic.version = 11 : i64} {
  func.func @dense_nn_kernel(%arg0: i32, %arg1: i32, %arg2: memref<8x2048xf32, #tpu.memory_space<vmem>>, %arg3: memref<2048x256xbf16, #tpu.memory_space<vmem>>, %arg4: memref<1x256xf32, #tpu.memory_space<vmem>>, %arg5: memref<256x128xf32, #tpu.memory_space<vmem>>, %arg6: memref<1x128xf32, #tpu.memory_space<vmem>>, %arg7: memref<8x128xf32, #tpu.memory_space<vmem>>, %arg8: memref<8x2048xbf16, #tpu.memory_space<vmem>>) attributes {dimension_semantics = [#tpu.dimension_semantics<parallel>, #tpu.dimension_semantics<arbitrary>], iteration_bounds = array<i64: 1, 4>, scalar_prefetch = 0 : i64, scratch_operands = 1 : i64, tpu.core_type = #tpu.core_type<tc>, window_params = [{transform_indices = @transform_0, window_bounds = array<i64: 8, 2048>}, {transform_indices = @transform_1, window_bounds = array<i64: 2048, 256>}, {transform_indices = @transform_2, window_bounds = array<i64: 1, 256>}, {transform_indices = @transform_3, window_bounds = array<i64: 256, 128>}, {pipeline_mode = #tpu.pipeline_mode<synchronous>, transform_indices = @transform_4, window_bounds = array<i64: 1, 128>}, {transform_indices = @transform_5, window_bounds = array<i64: 8, 128>}]} {
    %c0_i32 = arith.constant 0 : i32
    %0 = arith.cmpi eq, %arg1, %c0_i32 : i32
    %1 = arith.extui %0 : i1 to i32
    %c0_i32_0 = arith.constant 0 : i32
    %2 = arith.cmpi ne, %1, %c0_i32_0 : i32
    scf.if %2 {
      %c0_15 = arith.constant 0 : index
      %c0_16 = arith.constant 0 : index
      %19 = vector.load %arg2[%c0_15, %c0_16] : memref<8x2048xf32, #tpu.memory_space<vmem>>, vector<8x2048xf32>
      %20 = arith.mulf %19, %19 : vector<8x2048xf32>
      %cst_17 = arith.constant dense<0.000000e+00> : vector<8xf32>
      %21 = vector.multi_reduction <add>, %20, %cst_17 [1] : vector<8x2048xf32> to vector<8xf32>
      %22 = vector.shape_cast %21 : vector<8xf32> to vector<8x1xf32>
      %cst_18 = arith.constant 1.000000e-24 : f32
      %23 = vector.broadcast %cst_18 : f32 to vector<8x1xf32>
      %24 = arith.maximumf %22, %23 : vector<8x1xf32>
      %25 = math.rsqrt %24 : vector<8x1xf32>
      %26 = vector.broadcast %25 : vector<8x1xf32> to vector<8x2048xf32>
      %27 = arith.mulf %19, %26 : vector<8x2048xf32>
      %28 = arith.truncf %27 : vector<8x2048xf32> to vector<8x2048xbf16>
      %c0_19 = arith.constant 0 : index
      %c0_20 = arith.constant 0 : index
      %29 = vector.load %arg8[%c0_19, %c0_20] : memref<8x2048xbf16, #tpu.memory_space<vmem>>, vector<8x2048xbf16>
      tpu.vector_store %arg8[%c0_19, %c0_20], %28 {strides = array<i32>} : memref<8x2048xbf16, #tpu.memory_space<vmem>>, vector<8x2048xbf16>,
      %cst_21 = arith.constant 0.000000e+00 : f32
      %30 = vector.broadcast %cst_21 : f32 to vector<8x128xf32>
      %c0_22 = arith.constant 0 : index
      %c0_23 = arith.constant 0 : index
      %31 = vector.load %arg7[%c0_22, %c0_23] : memref<8x128xf32, #tpu.memory_space<vmem>>, vector<8x128xf32>
      tpu.vector_store %arg7[%c0_22, %c0_23], %30 {strides = array<i32>} : memref<8x128xf32, #tpu.memory_space<vmem>>, vector<8x128xf32>,
    } else {
    }
    %c0 = arith.constant 0 : index
    %c0_1 = arith.constant 0 : index
    %3 = vector.load %arg8[%c0, %c0_1] : memref<8x2048xbf16, #tpu.memory_space<vmem>>, vector<8x2048xbf16>
    %c0_2 = arith.constant 0 : index
    %c0_3 = arith.constant 0 : index
    %4 = vector.load %arg3[%c0_2, %c0_3] : memref<2048x256xbf16, #tpu.memory_space<vmem>>, vector<2048x256xbf16>
    %cst = arith.constant dense<0.000000e+00> : vector<8x256xf32>
    %5 = tpu.matmul %3, %4, %cst {dimension_numbers = #tpu.dot_dimension_numbers<[1], [0], [0], [1], [0, 0, 1, 1], [], []>} : vector<8x2048xbf16>, vector<2048x256xbf16>, vector<8x256xf32> -> vector<8x256xf32>
    %c0_4 = arith.constant 0 : index
    %c0_5 = arith.constant 0 : index
    %6 = vector.load %arg4[%c0_4, %c0_5] : memref<1x256xf32, #tpu.memory_space<vmem>>, vector<1x256xf32>
    %7 = vector.broadcast %6 : vector<1x256xf32> to vector<8x256xf32>
    %8 = arith.addf %5, %7 : vector<8x256xf32>
    %cst_6 = arith.constant 0.000000e+00 : f32
    %9 = vector.broadcast %cst_6 : f32 to vector<8x256xf32>
    %10 = arith.maximumf %8, %9 : vector<8x256xf32>
    %c0_7 = arith.constant 0 : index
    %c0_8 = arith.constant 0 : index
    %11 = vector.load %arg7[%c0_7, %c0_8] : memref<8x128xf32, #tpu.memory_space<vmem>>, vector<8x128xf32>
    %c0_9 = arith.constant 0 : index
    %c0_10 = arith.constant 0 : index
    %12 = vector.load %arg5[%c0_9, %c0_10] : memref<256x128xf32, #tpu.memory_space<vmem>>, vector<256x128xf32>
    %cst_11 = arith.constant dense<0.000000e+00> : vector<8x128xf32>
    %13 = tpu.matmul %10, %12, %cst_11 {dimension_numbers = #tpu.dot_dimension_numbers<[1], [0], [0], [1], [0, 0, 1, 1], [], []>} : vector<8x256xf32>, vector<256x128xf32>, vector<8x128xf32> -> vector<8x128xf32>
    %14 = arith.addf %11, %13 : vector<8x128xf32>
    %c0_12 = arith.constant 0 : index
    %c0_13 = arith.constant 0 : index
    %15 = vector.load %arg7[%c0_12, %c0_13] : memref<8x128xf32, #tpu.memory_space<vmem>>, vector<8x128xf32>
    tpu.vector_store %arg7[%c0_12, %c0_13], %14 {strides = array<i32>} : memref<8x128xf32, #tpu.memory_space<vmem>>, vector<8x128xf32>,
    %c3_i32 = arith.constant 3 : i32
    %16 = arith.cmpi eq, %arg1, %c3_i32 : i32
    %17 = arith.extui %16 : i1 to i32
    %c0_i32_14 = arith.constant 0 : i32
    %18 = arith.cmpi ne, %17, %c0_i32_14 : i32
    scf.if %18 {
      %c0_15 = arith.constant 0 : index
      %c0_16 = arith.constant 0 : index
      %19 = vector.load %arg7[%c0_15, %c0_16] : memref<8x128xf32, #tpu.memory_space<vmem>>, vector<8x128xf32>
      %c0_17 = arith.constant 0 : index
      %c0_18 = arith.constant 0 : index
      %20 = vector.load %arg6[%c0_17, %c0_18] : memref<1x128xf32, #tpu.memory_space<vmem>>, vector<1x128xf32>
      %21 = vector.broadcast %20 : vector<1x128xf32> to vector<8x128xf32>
      %22 = arith.addf %19, %21 : vector<8x128xf32>
      %c0_19 = arith.constant 0 : index
      %c0_20 = arith.constant 0 : index
      %23 = vector.load %arg7[%c0_19, %c0_20] : memref<8x128xf32, #tpu.memory_space<vmem>>, vector<8x128xf32>
      tpu.vector_store %arg7[%c0_19, %c0_20], %22 {strides = array<i32>} : memref<8x128xf32, #tpu.memory_space<vmem>>, vector<8x128xf32>,
    } else {
    }
    return
  }
  func.func @transform_0(%arg0: i32, %arg1: i32) -> (i32, i32) {
    %c0_i32 = arith.constant 0 : i32
    %c0_i32_0 = arith.constant 0 : i32
    return %arg0, %c0_i32 : i32, i32
  }
  func.func @transform_1(%arg0: i32, %arg1: i32) -> (i32, i32) {
    %c0_i32 = arith.constant 0 : i32
    %c0_i32_0 = arith.constant 0 : i32
    return %c0_i32, %arg1 : i32, i32
  }
  func.func @transform_2(%arg0: i32, %arg1: i32) -> (i32, i32) {
    %c0_i32 = arith.constant 0 : i32
    %c0_i32_0 = arith.constant 0 : i32
    return %c0_i32, %arg1 : i32, i32
  }
  func.func @transform_3(%arg0: i32, %arg1: i32) -> (i32, i32) {
    %c0_i32 = arith.constant 0 : i32
    %c0_i32_0 = arith.constant 0 : i32
    return %arg1, %c0_i32 : i32, i32
  }
  func.func @transform_4(%arg0: i32, %arg1: i32) -> (i32, i32) {
    %c0_i32 = arith.constant 0 : i32
    %c0_i32_0 = arith.constant 0 : i32
    %c0_i32_1 = arith.constant 0 : i32
    return %c0_i32, %c0_i32_0 : i32, i32
  }
  func.func @transform_5(%arg0: i32, %arg1: i32) -> (i32, i32) {
    %c0_i32 = arith.constant 0 : i32
    %c0_i32_0 = arith.constant 0 : i32
    return %arg0, %c0_i32 : i32, i32
  }
}

</mosaic_0001>

<llo_original>
// kernel: tpu_custom_call.1
$region0: #{tpu_custom_call.1}
  #allocation0 [shape = 'u32[]', space=smem, size = 0x4, offset = 0x4, fixed_abs, tag = 'smem constant byte address 0x4 - core index']
  #allocation1 [shape = 'u32[144,128]{1,0:T(1,128)}', space=vmem, size = 0x12000, scoped, tag = 'internal scratch']
  #allocation2 [shape = 'bf16[8,2048]{1,0:T(8,128)(2,1)}', space=vmem, size = 0x8000, scoped, tag = 'scratch operand']
  %s0 = inlined_call_operand.hbm [shape: f32[8,2048], index: 0, kind: input, shape index: {}]
  %s1 = inlined_call_operand.hbm [shape: bf16[2048,1024], index: 1, kind: input, shape index: {}]
  %s2 = inlined_call_operand.hbm [shape: f32[1,1024], index: 2, kind: input, shape index: {}]
  %s3 = inlined_call_operand.hbm [shape: f32[1024,128], index: 3, kind: input, shape index: {}]
  %s4 = inlined_call_operand.hbm [shape: f32[1,128], index: 4, kind: input, shape index: {}]
  %s5 = inlined_call_operand.hbm [shape: f32[8,128], index: 5, kind: output, shape index: {}]
  %s6 = sld [smem:[#allocation0]]
  $region81: #{tpu_custom_call.1} parent=0
    _
  %s8 = ssub.s32 1, %s6
  %s9 = scalar_select 0, %s8, %s6
  $region1: #{tpu_custom_call.1} parent=0
    #allocation3 [shape = 'u8[65536]{0}', space=vmem, size = 0x10000, scoped, tag = 'input window, operand 0, single buffered']
    #allocation4 [shape = 's32[2]{0}', space=sflag, size = 0x8, scoped, tag = 'scoped memory for tpu_custom_call.1']
    #allocation5 [shape = 's32[2]{0}', space=sflag, size = 0x8, scoped, tag = 'scoped memory for tpu_custom_call.1']
    #allocation6 [shape = 'u8[2097152]{0}', space=vmem, size = 0x200000, scoped, tag = 'input window, operand 1']
    #allocation7 [shape = 's32[2]{0}', space=sflag, size = 0x8, scoped, tag = 'scoped memory for tpu_custom_call.1']
    #allocation8 [shape = 'u8[2048]{0}', space=vmem, size = 0x800, scoped, tag = 'input window, operand 2']
    #allocation9 [shape = 'u8[262144]{0}', space=vmem, size = 0x40000, scoped, tag = 'input window, operand 3']
    #allocation10 [shape = 's32[2]{0}', space=sflag, size = 0x8, scoped, tag = 'scoped memory for tpu_custom_call.1']
    #allocation11 [shape = 'u8[512]{0}', space=vmem, size = 0x400, scoped, tag = 'input window, operand 4, single buffered']
    #allocation12 [shape = 'u8[4096]{0}', space=vmem, size = 0x1000, scoped, tag = 'output window, operand 0, single buffered']
    %10 = vsyncpa [#allocation4], 0
    %11 = vsyncpa [#allocation7], 0
    %s12 = scalar_lea.sflag [#allocation7], 1
    %13 = vsyncpa %s12, 0
    %14 = vsyncpa [#allocation10], 0
    %s15 = scalar_lea.sflag [#allocation10], 1
    %16 = vsyncpa %s15, 0
    %17 = vsyncpa [#allocation5], 0
    loop: start=0, step=1, limit=6
    $region2: #{tpu_custom_call.1} parent=1 // loop_pre_header
      _
    $region3: #{tpu_custom_call.1} parent=1 // loop_header
      %s19 = sphi 0, %s23
      %p20 = scmp.ge.s32.totalorder %s19, 6
      %s26 = sphi 0, %s38
      %s27 = sphi 0, %s34
      %s28 = sphi 0, %s26
      %s29 = sphi 0, %s27
      %s30 = sphi 0, %s28
      %s31 = sphi 0, %s29
      %s41 = sphi 0, %s43
      %s44 = sphi 0, %s41
      %s45 = sphi 0, %s44
      %s61 = sphi 0, %s45
      %s67 = sphi 0, %s69
      %s70 = sphi 0, %s67
      %s71 = sphi 0, %s70
      %s87 = sphi 0, %s71
      %s93 = sphi 0, %s95
      %s96 = sphi 0, %s93
      %s97 = sphi 0, %s96
      %s113 = sphi 0, %s97
      %s119 = sphi 0, %s121
      %s122 = sphi 0, %s119
      %s123 = sphi 0, %s122
      %s139 = sphi 0, %s123
      %s143 = sphi 0, %s143
      %s145 = sphi 0, %s143
      %s146 = sphi 0, %s145
      %s160 = sphi 0, %s146
      %s166 = sphi 0, %s168
      %s169 = sphi 0, %s166
      %s170 = sphi 0, %s169
      %s186 = sphi 0, %s170
    $region4: #{tpu_custom_call.1} parent=1 // loop_header_branch
      %22 = sbr.rel (%p20) target = $region8
    $region5: #{tpu_custom_call.1} parent=1 // loop_body
      %s24 = ssub.s32 %s19, 1
      %s25 = ssub.s32 %s19, 2
      %s32 = sadd.s32 1, %s27
      %p33 = scmp.ge.s32.totalorder %s32, 4
      %s34 = scalar_select %p33, 0, %s32
      %s35 = sadd.s32 1, %s26
      %s36 = scalar_select %p33, %s35, %s26
      %p37 = scmp.ge.s32.totalorder %s36, 1
      %s38 = scalar_select %p37, 0, %s36
      %s39 = ssub.s32 %s26, %s38
      %p40 = scmp.eq.s32.totalorder %s39, 0
      %s42 = sadd.s32 %s41, 1
      %s43 = scalar_select %p40, %s41, %s42
      %p46 = pneg %p40
      %p47 = scmp.eq.s32.totalorder %s19, 3
      %p48 = por %p46, %p47
      %p49 = scmp.ne.s32.totalorder %s41, %s44
      %p50 = scmp.eq.s32.totalorder %s19, 0
      %p51 = por %p49, %p50
      %p52 = scmp.ne.s32.totalorder %s41, %s44
      %p53 = scmp.eq.s32.totalorder %s24, 3
      %p54 = por %p52, %p53
      %p55 = scmp.ne.s32.totalorder %s44, %s45
      %p56 = scmp.eq.s32.totalorder %s24, 0
      %p57 = por %p55, %p56
      %p58 = scmp.ne.s32.totalorder %s44, %s45
      %p59 = scmp.eq.s32.totalorder %s25, 3
      %p60 = por %p58, %p59
      %p62 = scmp.ne.s32.totalorder %s45, %s61
      %p63 = scmp.eq.s32.totalorder %s25, 0
      %p64 = por %p62, %p63
      %s65 = ssub.s32 %s27, %s34
      %p66 = scmp.eq.s32.totalorder %s65, 0
      %s68 = sadd.s32 %s67, 1
      %s69 = scalar_select %p66, %s67, %s68
      %p72 = pneg %p66
      %p73 = scmp.eq.s32.totalorder %s19, 3
      %p74 = por %p72, %p73
      %p75 = scmp.ne.s32.totalorder %s67, %s70
      %p76 = scmp.eq.s32.totalorder %s19, 0
      %p77 = por %p75, %p76
      %p78 = scmp.ne.s32.totalorder %s67, %s70
      %p79 = scmp.eq.s32.totalorder %s24, 3
      %p80 = por %p78, %p79
      %p81 = scmp.ne.s32.totalorder %s70, %s71
      %p82 = scmp.eq.s32.totalorder %s24, 0
      %p83 = por %p81, %p82
      %p84 = scmp.ne.s32.totalorder %s70, %s71
      %p85 = scmp.eq.s32.totalorder %s25, 3
      %p86 = por %p84, %p85
      %p88 = scmp.ne.s32.totalorder %s71, %s87
      %p89 = scmp.eq.s32.totalorder %s25, 0
      %p90 = por %p88, %p89
      %s91 = ssub.s32 %s27, %s34
      %p92 = scmp.eq.s32.totalorder %s91, 0
      %s94 = sadd.s32 %s93, 1
      %s95 = scalar_select %p92, %s93, %s94
      %p98 = pneg %p92
      %p99 = scmp.eq.s32.totalorder %s19, 3
      %p100 = por %p98, %p99
      %p101 = scmp.ne.s32.totalorder %s93, %s96
      %p102 = scmp.eq.s32.totalorder %s19, 0
      %p103 = por %p101, %p102
      %p104 = scmp.ne.s32.totalorder %s93, %s96
      %p105 = scmp.eq.s32.totalorder %s24, 3
      %p106 = por %p104, %p105
      %p107 = scmp.ne.s32.totalorder %s96, %s97
      %p108 = scmp.eq.s32.totalorder %s24, 0
      %p109 = por %p107, %p108
      %p110 = scmp.ne.s32.totalorder %s96, %s97
      %p111 = scmp.eq.s32.totalorder %s25, 3
      %p112 = por %p110, %p111
      %p114 = scmp.ne.s32.totalorder %s97, %s113
      %p115 = scmp.eq.s32.totalorder %s25, 0
      %p116 = por %p114, %p115
      %s117 = ssub.s32 %s27, %s34
      %p118 = scmp.eq.s32.totalorder %s117, 0
      %s120 = sadd.s32 %s119, 1
      %s121 = scalar_select %p118, %s119, %s120
      %p124 = pneg %p118
      %p125 = scmp.eq.s32.totalorder %s19, 3
      %p126 = por %p124, %p125
      %p127 = scmp.ne.s32.totalorder %s119, %s122
      %p128 = scmp.eq.s32.totalorder %s19, 0
      %p129 = por %p127, %p128
      %p130 = scmp.ne.s32.totalorder %s119, %s122
      %p131 = scmp.eq.s32.totalorder %s24, 3
      %p132 = por %p130, %p131
      %p133 = scmp.ne.s32.totalorder %s122, %s123
      %p134 = scmp.eq.s32.totalorder %s24, 0
      %p135 = por %p133, %p134
      %p136 = scmp.ne.s32.totalorder %s122, %s123
      %p137 = scmp.eq.s32.totalorder %s25, 3
      %p138 = por %p136, %p137
      %p140 = scmp.ne.s32.totalorder %s123, %s139
      %p141 = scmp.eq.s32.totalorder %s25, 0
      %p142 = por %p140, %p141
      %s144 = sadd.s32 %s143, 1
      %p147 = scmp.eq.s32.totalorder %s19, 3
      %p148 = scmp.ne.s32.totalorder %s143, %s145
      %p149 = scmp.eq.s32.totalorder %s19, 0
      %p150 = por %p148, %p149
      %p151 = scmp.ne.s32.totalorder %s143, %s145
      %p152 = scmp.eq.s32.totalorder %s24, 3
      %p153 = por %p151, %p152
      %p154 = scmp.ne.s32.totalorder %s145, %s146
      %p155 = scmp.eq.s32.totalorder %s24, 0
      %p156 = por %p154, %p155
      %p157 = scmp.ne.s32.totalorder %s145, %s146
      %p158 = scmp.eq.s32.totalorder %s25, 3
      %p159 = por %p157, %p158
      %p161 = scmp.ne.s32.totalorder %s146, %s160
      %p162 = scmp.eq.s32.totalorder %s25, 0
      %p163 = por %p161, %p162
      %s164 = ssub.s32 %s26, %s38
      %p165 = scmp.eq.s32.totalorder %s164, 0
      %s167 = sadd.s32 %s166, 1
      %s168 = scalar_select %p165, %s166, %s167
      %p171 = pneg %p165
      %p172 = scmp.eq.s32.totalorder %s19, 3
      %p173 = por %p171, %p172
      %p174 = scmp.ne.s32.totalorder %s166, %s169
      %p175 = scmp.eq.s32.totalorder %s19, 0
      %p176 = por %p174, %p175
      %p177 = scmp.ne.s32.totalorder %s166, %s169
      %p178 = scmp.eq.s32.totalorder %s24, 3
      %p179 = por %p177, %p178
      %p180 = scmp.ne.s32.totalorder %s169, %s170
      %p181 = scmp.eq.s32.totalorder %s24, 0
      %p182 = por %p180, %p181
      %p183 = scmp.ne.s32.totalorder %s169, %s170
      %p184 = scmp.eq.s32.totalorder %s25, 3
      %p185 = por %p183, %p184
      %p187 = scmp.ne.s32.totalorder %s170, %s186
      %p188 = scmp.eq.s32.totalorder %s25, 0
      %p189 = por %p187, %p188
      %p190 = scmp.le.s32.totalorder 1, %s19
      %p191 = scmp.lt.s32.totalorder %s19, 5
      %p192 = pnand %p190, %p191
      %p193 = pneg %p192
      // Predicated region
      $region9: #{tpu_custom_call.1} parent=5 // pred_check
        _
      $region10: #{tpu_custom_call.1} parent=5 // pred_check_branch
        %195 = sbr.rel (%p192) target = $region12
      $region11: #{tpu_custom_call.1} parent=5 // pred_region
        %s196 = ssub.s32 %s19, 1
        // Predicated region
        $region13: #{tpu_custom_call.1} parent=11 // pred_check
          %p197 = pneg %p57
        $region14: #{tpu_custom_call.1} parent=11 // pred_check_branch
          %199 = sbr.rel (%p197) target = $region16
        $region15: #{tpu_custom_call.1} parent=11 // pred_region
          %s201 = ssub.s32 2048, 2048
          %202 = vsyncadd [#allocation4], %s201
          %s203 = smul.addr %s28, 16
          %s204 = smul.addr %s203, 128
          %s205 = scalar_lea.hbm %s0, %s204
          %s207 = sshll.u32 [#allocation3], 4
          %s208 = int_to_ptr.vmem [resolvable:$true] %s207
          %210 = dma.hbm_to_vmem [thread:$0]  %s205, 2048, %s208, [#allocation4]
        $region16: #{tpu_custom_call.1} parent=11 // pred_fallthru
          _
        // Predicated region
        $region17: #{tpu_custom_call.1} parent=11 // pred_check
          %p211 = pneg %p156
        $region18: #{tpu_custom_call.1} parent=11 // pred_check_branch
          %213 = sbr.rel (%p211) target = $region20
        $region19: #{tpu_custom_call.1} parent=11 // pred_region
          %s215 = ssub.s32 16, 16
          %216 = vsyncadd [#allocation10], %s215
          %s218 = sshll.u32 [#allocation11], 4
          %s219 = int_to_ptr.vmem [resolvable:$true] %s218
          %221 = dma.hbm_to_vmem [thread:$0]  %s4, 16, %s219, [#allocation10]
        $region20: #{tpu_custom_call.1} parent=11 // pred_fallthru
          _
      $region12: #{tpu_custom_call.1} parent=5 // pred_fallthru
        _
      %p222 = scmp.lt.s32.totalorder %s19, 4
      // Predicated region
      $region21: #{tpu_custom_call.1} parent=5 // pred_check
        %p223 = pneg %p222
      $region22: #{tpu_custom_call.1} parent=5 // pred_check_branch
        %225 = sbr.rel (%p223) target = $region24
      $region23: #{tpu_custom_call.1} parent=5 // pred_region
        // Predicated region
        $region25: #{tpu_custom_call.1} parent=23 // pred_check
          %p226 = pneg %p77
        $region26: #{tpu_custom_call.1} parent=23 // pred_check_branch
          %228 = sbr.rel (%p226) target = $region28
        $region27: #{tpu_custom_call.1} parent=23 // pred_region
          %s229 = sand.u32 %s19, 1
          %s230 = scalar_lea.sflag [#allocation7], %s229
          %s231 = sand.u32 %s67, 1
          %s232 = smul.addr %s231, 2048
          %s233 = scalar_lea.vmem [#allocation6], %s232
          %s234 = smul.u32 2, %s27
          %s236 = ssub.s32 32768, 32768
          %237 = vsyncadd %s230, %s236
          %s238 = smul.addr %s234, 64
          %s239 = scalar_lea.hbm %s1, %s238
          %s240 = sshll.u32 %s233, 4
          %s241 = int_to_ptr.vmem [resolvable:$true] %s240
          %246 = dma.hbm_to_vmem [thread:$0]  %s239, 32768, %s241, %s230, 512, 128, 8
        $region28: #{tpu_custom_call.1} parent=23 // pred_fallthru
          _
        // Predicated region
        $region29: #{tpu_custom_call.1} parent=23 // pred_check
          %p247 = pneg %p103
        $region30: #{tpu_custom_call.1} parent=23 // pred_check_branch
          %249 = sbr.rel (%p247) target = $region32
        $region31: #{tpu_custom_call.1} parent=23 // pred_region
          %s250 = sand.u32 %s19, 1
          %s251 = scalar_lea.sflag [#allocation7], %s250
          %s252 = sand.u32 %s93, 1
          %s253 = smul.addr %s252, 2
          %s254 = scalar_lea.vmem [#allocation8], %s253
          %s255 = smul.u32 2, %s27
          %s257 = ssub.s32 32, 32
          %258 = vsyncadd %s251, %s257
          %s259 = smul.addr %s255, 16
          %s260 = scalar_lea.hbm %s2, %s259
          %s262 = sshll.u32 %s254, 4
          %s263 = int_to_ptr.vmem [resolvable:$true] %s262
          %265 = dma.hbm_to_vmem [thread:$0]  %s260, 32, %s263, %s251
        $region32: #{tpu_custom_call.1} parent=23 // pred_fallthru
          _
        // Predicated region
        $region33: #{tpu_custom_call.1} parent=23 // pred_check
          %p266 = pneg %p129
        $region34: #{tpu_custom_call.1} parent=23 // pred_check_branch
          %268 = sbr.rel (%p266) target = $region36
        $region35: #{tpu_custom_call.1} parent=23 // pred_region
          %s269 = sand.u32 %s19, 1
          %s270 = scalar_lea.sflag [#allocation10], %s269
          %s271 = sand.u32 %s119, 1
          %s272 = smul.addr %s271, 256
          %s273 = scalar_lea.vmem [#allocation9], %s272
          %s274 = smul.u32 32, %s27
          %s276 = ssub.s32 4096, 4096
          %277 = vsyncadd %s270, %s276
          %s278 = smul.addr %s274, 128
          %s279 = scalar_lea.hbm %s3, %s278
          %s280 = sshll.u32 %s273, 4
          %s281 = int_to_ptr.vmem [resolvable:$true] %s280
          %286 = dma.hbm_to_vmem [thread:$0]  %s279, 4096, %s281, %s270, 128, 128, 8
        $region36: #{tpu_custom_call.1} parent=23 // pred_fallthru
          _
      $region24: #{tpu_custom_call.1} parent=5 // pred_fallthru
        _
      %p287 = scmp.le.s32.totalorder 1, %s19
      %p288 = scmp.lt.s32.totalorder %s19, 5
      %p289 = pnand %p287, %p288
      %p290 = pneg %p289
      // Predicated region
      $region37: #{tpu_custom_call.1} parent=5 // pred_check
        _
      $region38: #{tpu_custom_call.1} parent=5 // pred_check_branch
        %292 = sbr.rel (%p289) target = $region40
      $region39: #{tpu_custom_call.1} parent=5 // pred_region
        %s293 = ssub.s32 %s19, 1
        // Predicated region
        $region41: #{tpu_custom_call.1} parent=39 // pred_check
          %p294 = pneg %p57
        $region42: #{tpu_custom_call.1} parent=39 // pred_check_branch
          %296 = sbr.rel (%p294) target = $region44
        $region43: #{tpu_custom_call.1} parent=39 // pred_region
          %297 = dma.done [#allocation4], 2048
        $region44: #{tpu_custom_call.1} parent=39 // pred_fallthru
          _
        %s298 = sand.u32 %s24, 1
        %s299 = scalar_lea.sflag [#allocation7], %s298
        %s300 = sand.u32 %s70, 1
        %s301 = smul.addr %s300, 2048
        %s302 = scalar_lea.vmem [#allocation6], %s301
        // Predicated region
        $region45: #{tpu_custom_call.1} parent=39 // pred_check
          %p303 = pneg %p83
        $region46: #{tpu_custom_call.1} parent=39 // pred_check_branch
          %305 = sbr.rel (%p303) target = $region48
        $region47: #{tpu_custom_call.1} parent=39 // pred_region
          %306 = dma.done %s299, 32768
        $region48: #{tpu_custom_call.1} parent=39 // pred_fallthru
          _
        %s307 = sand.u32 %s24, 1
        %s308 = scalar_lea.sflag [#allocation7], %s307
        %s309 = sand.u32 %s96, 1
        %s310 = smul.addr %s309, 2
        %s311 = scalar_lea.vmem [#allocation8], %s310
        // Predicated region
        $region49: #{tpu_custom_call.1} parent=39 // pred_check
          %p312 = pneg %p109
        $region50: #{tpu_custom_call.1} parent=39 // pred_check_branch
          %314 = sbr.rel (%p312) target = $region52
        $region51: #{tpu_custom_call.1} parent=39 // pred_region
          %315 = dma.done %s308, 32
        $region52: #{tpu_custom_call.1} parent=39 // pred_fallthru
          _
        %s316 = sand.u32 %s24, 1
        %s317 = scalar_lea.sflag [#allocation10], %s316
        %s318 = sand.u32 %s122, 1
        %s319 = smul.addr %s318, 256
        %s320 = scalar_lea.vmem [#allocation9], %s319
        // Predicated region
        $region53: #{tpu_custom_call.1} parent=39 // pred_check
          %p321 = pneg %p135
        $region54: #{tpu_custom_call.1} parent=39 // pred_check_branch
          %323 = sbr.rel (%p321) target = $region56
        $region55: #{tpu_custom_call.1} parent=39 // pred_region
          %324 = dma.done %s317, 4096
        $region56: #{tpu_custom_call.1} parent=39 // pred_fallthru
          _
        // Predicated region
        $region57: #{tpu_custom_call.1} parent=39 // pred_check
          %p325 = pneg %p156
        $region58: #{tpu_custom_call.1} parent=39 // pred_check_branch
          %327 = sbr.rel (%p325) target = $region60
        $region59: #{tpu_custom_call.1} parent=39 // pred_region
          %328 = dma.done [#allocation10], 16
        $region60: #{tpu_custom_call.1} parent=39 // pred_fallthru
          _
        %p329 = pneg %p57
        %p330 = pneg %p54
        %s331 = sand.u32 %s24, 1
        %s332 = scalar_lea.sflag [#allocation7], %s331
        %s333 = sand.u32 %s70, 1
        %s334 = smul.addr %s333, 2048
        %s335 = scalar_lea.vmem [#allocation6], %s334
        %p336 = pneg %p83
        %p337 = pneg %p80
        %s338 = sand.u32 %s24, 1
        %s339 = scalar_lea.sflag [#allocation7], %s338
        %s340 = sand.u32 %s96, 1
        %s341 = smul.addr %s340, 2
        %s342 = scalar_lea.vmem [#allocation8], %s341
        %p343 = pneg %p109
        %p344 = pneg %p106
        %s345 = sand.u32 %s24, 1
        %s346 = scalar_lea.sflag [#allocation10], %s345
        %s347 = sand.u32 %s122, 1
        %s348 = smul.addr %s347, 256
        %s349 = scalar_lea.vmem [#allocation9], %s348
        %p350 = pneg %p135
        %p351 = pneg %p132
        %p352 = pneg %p156
        %p353 = pneg %p153
        %p354 = pneg %p182
        %p355 = pneg %p179
        %s356 = smul.u32 2, %s29
        %s357 = smul.u32 2, %s29
        %s358 = smul.u32 32, %s29
        %p359 = scmp.eq.s32.totalorder %s29, 0
        // Predicated region
        $region61: #{tpu_custom_call.1} parent=39 // pred_check
          %p360 = pneg %p359
        $region62: #{tpu_custom_call.1} parent=39 // pred_check_branch
          %362 = sbr.rel (%p360) target = $region64
        $region63: #{tpu_custom_call.1} parent=39 // pred_region
          %v363 = vld [vmem:[#allocation3] sm:$0xff]
          %v364 = vld [vmem:[#allocation3 + $0x8] sm:$0xff]
          %v365 = vld [vmem:[#allocation3 + $0x10] sm:$0xff]
          %v366 = vld [vmem:[#allocation3 + $0x18] sm:$0xff]
          %v367 = vld [vmem:[#allocation3 + $0x20] sm:$0xff]
          %v368 = vld [vmem:[#allocation3 + $0x28] sm:$0xff]
          %v369 = vld [vmem:[#allocation3 + $0x30] sm:$0xff]
          %v370 = vld [vmem:[#allocation3 + $0x38] sm:$0xff]
          %v371 = vld [vmem:[#allocation3 + $0x40] sm:$0xff]
          %v372 = vld [vmem:[#allocation3 + $0x48] sm:$0xff]
          %v373 = vld [vmem:[#allocation3 + $0x50] sm:$0xff]
          %v374 = vld [vmem:[#allocation3 + $0x58] sm:$0xff]
          %v375 = vld [vmem:[#allocation3 + $0x60] sm:$0xff]
          %v376 = vld [vmem:[#allocation3 + $0x68] sm:$0xff]
          %v377 = vld [vmem:[#allocation3 + $0x70] sm:$0xff]
          %v378 = vld [vmem:[#allocation3 + $0x78] sm:$0xff]
          %v379 = vmul.f32 %v363, %v363
          %v380 = vmul.f32 %v364, %v364
          %v381 = vmul.f32 %v365, %v365
          %v382 = vmul.f32 %v366, %v366
          %v383 = vmul.f32 %v367, %v367
          %v384 = vmul.f32 %v368, %v368
          %v385 = vmul.f32 %v369, %v369
          %v386 = vmul.f32 %v370, %v370
          %v387 = vmul.f32 %v371, %v371
          %v388 = vmul.f32 %v372, %v372
          %v389 = vmul.f32 %v373, %v373
          %v390 = vmul.f32 %v374, %v374
          %v391 = vmul.f32 %v375, %v375
          %v392 = vmul.f32 %v376, %v376
          %v393 = vmul.f32 %v377, %v377
          %v394 = vmul.f32 %v378, %v378
          %v395 = vadd.f32 %v379, %v380
          %v396 = vadd.f32 %v395, %v381
          %v397 = vadd.f32 %v396, %v382
          %v398 = vadd.f32 %v397, %v383
          %v399 = vadd.f32 %v398, %v384
          %v400 = vadd.f32 %v399, %v385
          %v401 = vadd.f32 %v400, %v386
          %v402 = vadd.f32 %v401, %v387
          %v403 = vadd.f32 %v402, %v388
          %v404 = vadd.f32 %v403, %v389
          %v405 = vadd.f32 %v404, %v390
          %v406 = vadd.f32 %v405, %v391
          %v407 = vadd.f32 %v406, %v392
          %v408 = vadd.f32 %v407, %v393
          %v409 = vadd.f32 %v408, %v394
          %410 = vadd.xlane.f32.xlu0 %v409
          %v411 = vpop.xlane.xlu0 %410
          %v412 = vmax.f32 %v411, 1e-24
          %v413 = vrsqrt.pop %v412
          %v414 = vmul.f32 %v363, %v413
          %v415 = vmul.f32 %v364, %v413
          %v416 = vmul.f32 %v365, %v413
          %v417 = vmul.f32 %v366, %v413
          %v418 = vmul.f32 %v367, %v413
          %v419 = vmul.f32 %v368, %v413
          %v420 = vmul.f32 %v369, %v413
          %v421 = vmul.f32 %v370, %v413
          %v422 = vmul.f32 %v371, %v413
          %v423 = vmul.f32 %v372, %v413
          %v424 = vmul.f32 %v373, %v413
          %v425 = vmul.f32 %v374, %v413
          %v426 = vmul.f32 %v375, %v413
          %v427 = vmul.f32 %v376, %v413
          %v428 = vmul.f32 %v377, %v413
          %v429 = vmul.f32 %v378, %v413
          %v430 = vpack.c.bf16 %v414, %v414
          %v431 = vpack.c.bf16 %v415, %v415
          %v432 = vpack.c.bf16 %v416, %v416
          %v433 = vpack.c.bf16 %v417, %v417
          %v434 = vpack.c.bf16 %v418, %v418
          %v435 = vpack.c.bf16 %v419, %v419
          %v436 = vpack.c.bf16 %v420, %v420
          %v437 = vpack.c.bf16 %v421, %v421
          %v438 = vpack.c.bf16 %v422, %v422
          %v439 = vpack.c.bf16 %v423, %v423
          %v440 = vpack.c.bf16 %v424, %v424
          %v441 = vpack.c.bf16 %v425, %v425
          %v442 = vpack.c.bf16 %v426, %v426
          %v443 = vpack.c.bf16 %v427, %v427
          %v444 = vpack.c.bf16 %v428, %v428
          %v445 = vpack.c.bf16 %v429, %v429
          %v462 = vunpack.c.l.b16 %v430
          %v463 = vunpack.c.l.b16 %v431
          %v464 = vunpack.c.l.b16 %v432
          %v465 = vunpack.c.l.b16 %v433
          %v466 = vunpack.c.l.b16 %v434
          %v467 = vunpack.c.l.b16 %v435
          %v468 = vunpack.c.l.b16 %v436
          %v469 = vunpack.c.l.b16 %v437
          %v470 = vunpack.c.l.b16 %v438
          %v471 = vunpack.c.l.b16 %v439
          %v472 = vunpack.c.l.b16 %v440
          %v473 = vunpack.c.l.b16 %v441
          %v474 = vunpack.c.l.b16 %v442
          %v475 = vunpack.c.l.b16 %v443
          %v476 = vunpack.c.l.b16 %v444
          %v477 = vunpack.c.l.b16 %v445
          %v478 = vpack.c.b16 %v463, %v462
          %v479 = vpack.c.b16 %v465, %v464
          %v480 = vpack.c.b16 %v467, %v466
          %v481 = vpack.c.b16 %v469, %v468
          %v482 = vpack.c.b16 %v471, %v470
          %v483 = vpack.c.b16 %v473, %v472
          %v484 = vpack.c.b16 %v475, %v474
          %v485 = vpack.c.b16 %v477, %v476
          %494 = vst [vmem:[#allocation2] sm:$0xff] %v478
          %495 = vst [vmem:[#allocation2 + $0x8] sm:$0xff] %v479
          %496 = vst [vmem:[#allocation2 + $0x10] sm:$0xff] %v480
          %497 = vst [vmem:[#allocation2 + $0x18] sm:$0xff] %v481
          %498 = vst [vmem:[#allocation2 + $0x20] sm:$0xff] %v482
          %499 = vst [vmem:[#allocation2 + $0x28] sm:$0xff] %v483
          %500 = vst [vmem:[#allocation2 + $0x30] sm:$0xff] %v484
          %501 = vst [vmem:[#allocation2 + $0x38] sm:$0xff] %v485
          %502 = vst [vmem:[#allocation12] sm:$0xff] 0.0
        $region64: #{tpu_custom_call.1} parent=39 // pred_fallthru
          _
        %v503 = vld [vmem:[#allocation2] sm:$0xff]
        %v504 = vld [vmem:[#allocation2 + $0x8] sm:$0xff]
        %v505 = vld [vmem:[#allocation2 + $0x10] sm:$0xff]
        %v506 = vld [vmem:[#allocation2 + $0x18] sm:$0xff]
        %v507 = vld [vmem:[#allocation2 + $0x20] sm:$0xff]
        %v508 = vld [vmem:[#allocation2 + $0x28] sm:$0xff]
        %v509 = vld [vmem:[#allocation2 + $0x30] sm:$0xff]
        %v510 = vld [vmem:[#allocation2 + $0x38] sm:$0xff]
        %v511 = vld [vmem:[%s302] sm:$0xff]
        %v512 = vld [vmem:[%s302 + $0x8] sm:$0xff]
        %v513 = vld [vmem:[%s302 + $0x10] sm:$0xff]
        %v514 = vld [vmem:[%s302 + $0x18] sm:$0xff]
        %v515 = vld [vmem:[%s302 + $0x20] sm:$0xff]
        %v516 = vld [vmem:[%s302 + $0x28] sm:$0xff]
        %v517 = vld [vmem:[%s302 + $0x30] sm:$0xff]
        %v518 = vld [vmem:[%s302 + $0x38] sm:$0xff]
        %v519 = vld [vmem:[%s302 + $0x40] sm:$0xff]
        %v520 = vld [vmem:[%s302 + $0x48] sm:$0xff]
        %v521 = vld [vmem:[%s302 + $0x50] sm:$0xff]
        %v522 = vld [vmem:[%s302 + $0x58] sm:$0xff]
        %v523 = vld [vmem:[%s302 + $0x60] sm:$0xff]
        %v524 = vld [vmem:[%s302 + $0x68] sm:$0xff]
        %v525 = vld [vmem:[%s302 + $0x70] sm:$0xff]
        %v526 = vld [vmem:[%s302 + $0x78] sm:$0xff]
        %v527 = vld [vmem:[%s302 + $0x80] sm:$0xff]
        %v528 = vld [vmem:[%s302 + $0x88] sm:$0xff]
        %v529 = vld [vmem:[%s302 + $0x90] sm:$0xff]
        %v530 = vld [vmem:[%s302 + $0x98] sm:$0xff]
        %v531 = vld [vmem:[%s302 + $0xa0] sm:$0xff]
        %v532 = vld [vmem:[%s302 + $0xa8] sm:$0xff]
        %v533 = vld [vmem:[%s302 + $0xb0] sm:$0xff]
        %v534 = vld [vmem:[%s302 + $0xb8] sm:$0xff]
        %v535 = vld [vmem:[%s302 + $0xc0] sm:$0xff]
        %v536 = vld [vmem:[%s302 + $0xc8] sm:$0xff]
        %v537 = vld [vmem:[%s302 + $0xd0] sm:$0xff]
        %v538 = vld [vmem:[%s302 + $0xd8] sm:$0xff]
        %v539 = vld [vmem:[%s302 + $0xe0] sm:$0xff]
        %v540 = vld [vmem:[%s302 + $0xe8] sm:$0xff]
        %v541 = vld [vmem:[%s302 + $0xf0] sm:$0xff]
        %v542 = vld [vmem:[%s302 + $0xf8] sm:$0xff]
        %v543 = vld [vmem:[%s302 + $0x100] sm:$0xff]
        %v544 = vld [vmem:[%s302 + $0x108] sm:$0xff]
        %v545 = vld [vmem:[%s302 + $0x110] sm:$0xff]
        %v546 = vld [vmem:[%s302 + $0x118] sm:$0xff]
        %v547 = vld [vmem:[%s302 + $0x120] sm:$0xff]
        %v548 = vld [vmem:[%s302 + $0x128] sm:$0xff]
        %v549 = vld [vmem:[%s302 + $0x130] sm:$0xff]
        %v550 = vld [vmem:[%s302 + $0x138] sm:$0xff]
        %v551 = vld [vmem:[%s302 + $0x140] sm:$0xff]
        %v552 = vld [vmem:[%s302 + $0x148] sm:$0xff]
        %v553 = vld [vmem:[%s302 + $0x150] sm:$0xff]
        %v554 = vld [vmem:[%s302 + $0x158] sm:$0xff]
        %v555 = vld [vmem:[%s302 + $0x160] sm:$0xff]
        %v556 = vld [vmem:[%s302 + $0x168] sm:$0xff]
        %v557 = vld [vmem:[%s302 + $0x170] sm:$0xff]
        %v558 = vld [vmem:[%s302 + $0x178] sm:$0xff]
        %v559 = vld [vmem:[%s302 + $0x180] sm:$0xff]
        %v560 = vld [vmem:[%s302 + $0x188] sm:$0xff]
        %v561 = vld [vmem:[%s302 + $0x190] sm:$0xff]
        %v562 = vld [vmem:[%s302 + $0x198] sm:$0xff]
        %v563 = vld [vmem:[%s302 + $0x1a0] sm:$0xff]
        %v564 = vld [vmem:[%s302 + $0x1a8] sm:$0xff]
        %v565 = vld [vmem:[%s302 + $0x1b0] sm:$0xff]
        %v566 = vld [vmem:[%s302 + $0x1b8] sm:$0xff]
        %v567 = vld [vmem:[%s302 + $0x1c0] sm:$0xff]
        %v568 = vld [vmem:[%s302 + $0x1c8] sm:$0xff]
        %v569 = vld [vmem:[%s302 + $0x1d0] sm:$0xff]
        %v570 = vld [vmem:[%s302 + $0x1d8] sm:$0xff]
        %v571 = vld [vmem:[%s302 + $0x1e0] sm:$0xff]
        %v572 = vld [vmem:[%s302 + $0x1e8] sm:$0xff]
        %v573 = vld [vmem:[%s302 + $0x1f0] sm:$0xff]
        %v574 = vld [vmem:[%s302 + $0x1f8] sm:$0xff]
        %v575 = vld [vmem:[%s302 + $0x200] sm:$0xff]
        %v576 = vld [vmem:[%s302 + $0x208] sm:$0xff]
        %v577 = vld [vmem:[%s302 + $0x210] sm:$0xff]
        %v578 = vld [vmem:[%s302 + $0x218] sm:$0xff]
        %v579 = vld [vmem:[%s302 + $0x220] sm:$0xff]
        %v580 = vld [vmem:[%s302 + $0x228] sm:$0xff]
        %v581 = vld [vmem:[%s302 + $0x230] sm:$0xff]
        %v582 = vld [vmem:[%s302 + $0x238] sm:$0xff]
        %v583 = vld [vmem:[%s302 + $0x240] sm:$0xff]
        %v584 = vld [vmem:[%s302 + $0x248] sm:$0xff]
        %v585 = vld [vmem:[%s302 + $0x250] sm:$0xff]
        %v586 = vld [vmem:[%s302 + $0x258] sm:$0xff]
        %v587 = vld [vmem:[%s302 + $0x260] sm:$0xff]
        %v588 = vld [vmem:[%s302 + $0x268] sm:$0xff]
        %v589 = vld [vmem:[%s302 + $0x270] sm:$0xff]
        %v590 = vld [vmem:[%s302 + $0x278] sm:$0xff]
        %v591 = vld [vmem:[%s302 + $0x280] sm:$0xff]
        %v592 = vld [vmem:[%s302 + $0x288] sm:$0xff]
        %v593 = vld [vmem:[%s302 + $0x290] sm:$0xff]
        %v594 = vld [vmem:[%s302 + $0x298] sm:$0xff]
        %v595 = vld [vmem:[%s302 + $0x2a0] sm:$0xff]
        %v596 = vld [vmem:[%s302 + $0x2a8] sm:$0xff]
        %v597 = vld [vmem:[%s302 + $0x2b0] sm:$0xff]
        %v598 = vld [vmem:[%s302 + $0x2b8] sm:$0xff]
        %v599 = vld [vmem:[%s302 + $0x2c0] sm:$0xff]
        %v600 = vld [vmem:[%s302 + $0x2c8] sm:$0xff]
        %v601 = vld [vmem:[%s302 + $0x2d0] sm:$0xff]
        %v602 = vld [vmem:[%s302 + $0x2d8] sm:$0xff]
        %v603 = vld [vmem:[%s302 + $0x2e0] sm:$0xff]
        %v604 = vld [vmem:[%s302 + $0x2e8] sm:$0xff]
        %v605 = vld [vmem:[%s302 + $0x2f0] sm:$0xff]
        %v606 = vld [vmem:[%s302 + $0x2f8] sm:$0xff]
        %v607 = vld [vmem:[%s302 + $0x300] sm:$0xff]
        %v608 = vld [vmem:[%s302 + $0x308] sm:$0xff]
        %v609 = vld [vmem:[%s302 + $0x310] sm:$0xff]
        %v610 = vld [vmem:[%s302 + $0x318] sm:$0xff]
        %v611 = vld [vmem:[%s302 + $0x320] sm:$0xff]
        %v612 = vld [vmem:[%s302 + $0x328] sm:$0xff]
        %v613 = vld [vmem:[%s302 + $0x330] sm:$0xff]
        %v614 = vld [vmem:[%s302 + $0x338] sm:$0xff]
        %v615 = vld [vmem:[%s302 + $0x340] sm:$0xff]
        %v616 = vld [vmem:[%s302 + $0x348] sm:$0xff]
        %v617 = vld [vmem:[%s302 + $0x350] sm:$0xff]
        %v618 = vld [vmem:[%s302 + $0x358] sm:$0xff]
        %v619 = vld [vmem:[%s302 + $0x360] sm:$0xff]
        %v620 = vld [vmem:[%s302 + $0x368] sm:$0xff]
        %v621 = vld [vmem:[%s302 + $0x370] sm:$0xff]
        %v622 = vld [vmem:[%s302 + $0x378] sm:$0xff]
        %v623 = vld [vmem:[%s302 + $0x380] sm:$0xff]
        %v624 = vld [vmem:[%s302 + $0x388] sm:$0xff]
        %v625 = vld [vmem:[%s302 + $0x390] sm:$0xff]
        %v626 = vld [vmem:[%s302 + $0x398] sm:$0xff]
        %v627 = vld [vmem:[%s302 + $0x3a0] sm:$0xff]
        %v628 = vld [vmem:[%s302 + $0x3a8] sm:$0xff]
        %v629 = vld [vmem:[%s302 + $0x3b0] sm:$0xff]
        %v630 = vld [vmem:[%s302 + $0x3b8] sm:$0xff]
        %v631 = vld [vmem:[%s302 + $0x3c0] sm:$0xff]
        %v632 = vld [vmem:[%s302 + $0x3c8] sm:$0xff]
        %v633 = vld [vmem:[%s302 + $0x3d0] sm:$0xff]
        %v634 = vld [vmem:[%s302 + $0x3d8] sm:$0xff]
        %v635 = vld [vmem:[%s302 + $0x3e0] sm:$0xff]
        %v636 = vld [vmem:[%s302 + $0x3e8] sm:$0xff]
        %v637 = vld [vmem:[%s302 + $0x3f0] sm:$0xff]
        %v638 = vld [vmem:[%s302 + $0x3f8] sm:$0xff]
        %v639 = vld [vmem:[%s302 + $0x400] sm:$0xff]
        %v640 = vld [vmem:[%s302 + $0x408] sm:$0xff]
        %v641 = vld [vmem:[%s302 + $0x410] sm:$0xff]
        %v642 = vld [vmem:[%s302 + $0x418] sm:$0xff]
        %v643 = vld [vmem:[%s302 + $0x420] sm:$0xff]
        %v644 = vld [vmem:[%s302 + $0x428] sm:$0xff]
        %v645 = vld [vmem:[%s302 + $0x430] sm:$0xff]
        %v646 = vld [vmem:[%s302 + $0x438] sm:$0xff]
        %v647 = vld [vmem:[%s302 + $0x440] sm:$0xff]
        %v648 = vld [vmem:[%s302 + $0x448] sm:$0xff]
        %v649 = vld [vmem:[%s302 + $0x450] sm:$0xff]
        %v650 = vld [vmem:[%s302 + $0x458] sm:$0xff]
        %v651 = vld [vmem:[%s302 + $0x460] sm:$0xff]
        %v652 = vld [vmem:[%s302 + $0x468] sm:$0xff]
        %v653 = vld [vmem:[%s302 + $0x470] sm:$0xff]
        %v654 = vld [vmem:[%s302 + $0x478] sm:$0xff]
        %v655 = vld [vmem:[%s302 + $0x480] sm:$0xff]
        %v656 = vld [vmem:[%s302 + $0x488] sm:$0xff]
        %v657 = vld [vmem:[%s302 + $0x490] sm:$0xff]
        %v658 = vld [vmem:[%s302 + $0x498] sm:$0xff]
        %v659 = vld [vmem:[%s302 + $0x4a0] sm:$0xff]
        %v660 = vld [vmem:[%s302 + $0x4a8] sm:$0xff]
        %v661 = vld [vmem:[%s302 + $0x4b0] sm:$0xff]
        %v662 = vld [vmem:[%s302 + $0x4b8] sm:$0xff]
        %v663 = vld [vmem:[%s302 + $0x4c0] sm:$0xff]
        %v664 = vld [vmem:[%s302 + $0x4c8] sm:$0xff]
        %v665 = vld [vmem:[%s302 + $0x4d0] sm:$0xff]
        %v666 = vld [vmem:[%s302 + $0x4d8] sm:$0xff]
        %v667 = vld [vmem:[%s302 + $0x4e0] sm:$0xff]
        %v668 = vld [vmem:[%s302 + $0x4e8] sm:$0xff]
        %v669 = vld [vmem:[%s302 + $0x4f0] sm:$0xff]
        %v670 = vld [vmem:[%s302 + $0x4f8] sm:$0xff]
        %v671 = vld [vmem:[%s302 + $0x500] sm:$0xff]
        %v672 = vld [vmem:[%s302 + $0x508] sm:$0xff]
        %v673 = vld [vmem:[%s302 + $0x510] sm:$0xff]
        %v674 = vld [vmem:[%s302 + $0x518] sm:$0xff]
        %v675 = vld [vmem:[%s302 + $0x520] sm:$0xff]
        %v676 = vld [vmem:[%s302 + $0x528] sm:$0xff]
        %v677 = vld [vmem:[%s302 + $0x530] sm:$0xff]
        %v678 = vld [vmem:[%s302 + $0x538] sm:$0xff]
        %v679 = vld [vmem:[%s302 + $0x540] sm:$0xff]
        %v680 = vld [vmem:[%s302 + $0x548] sm:$0xff]
        %v681 = vld [vmem:[%s302 + $0x550] sm:$0xff]
        %v682 = vld [vmem:[%s302 + $0x558] sm:$0xff]
        %v683 = vld [vmem:[%s302 + $0x560] sm:$0xff]
        %v684 = vld [vmem:[%s302 + $0x568] sm:$0xff]
        %v685 = vld [vmem:[%s302 + $0x570] sm:$0xff]
        %v686 = vld [vmem:[%s302 + $0x578] sm:$0xff]
        %v687 = vld [vmem:[%s302 + $0x580] sm:$0xff]
        %v688 = vld [vmem:[%s302 + $0x588] sm:$0xff]
        %v689 = vld [vmem:[%s302 + $0x590] sm:$0xff]
        %v690 = vld [vmem:[%s302 + $0x598] sm:$0xff]
        %v691 = vld [vmem:[%s302 + $0x5a0] sm:$0xff]
        %v692 = vld [vmem:[%s302 + $0x5a8] sm:$0xff]
        %v693 = vld [vmem:[%s302 + $0x5b0] sm:$0xff]
        %v694 = vld [vmem:[%s302 + $0x5b8] sm:$0xff]
        %v695 = vld [vmem:[%s302 + $0x5c0] sm:$0xff]
        %v696 = vld [vmem:[%s302 + $0x5c8] sm:$0xff]
        %v697 = vld [vmem:[%s302 + $0x5d0] sm:$0xff]
        %v698 = vld [vmem:[%s302 + $0x5d8] sm:$0xff]
        %v699 = vld [vmem:[%s302 + $0x5e0] sm:$0xff]
        %v700 = vld [vmem:[%s302 + $0x5e8] sm:$0xff]
        %v701 = vld [vmem:[%s302 + $0x5f0] sm:$0xff]
        %v702 = vld [vmem:[%s302 + $0x5f8] sm:$0xff]
        %v703 = vld [vmem:[%s302 + $0x600] sm:$0xff]
        %v704 = vld [vmem:[%s302 + $0x608] sm:$0xff]
        %v705 = vld [vmem:[%s302 + $0x610] sm:$0xff]
        %v706 = vld [vmem:[%s302 + $0x618] sm:$0xff]
        %v707 = vld [vmem:[%s302 + $0x620] sm:$0xff]
        %v708 = vld [vmem:[%s302 + $0x628] sm:$0xff]
        %v709 = vld [vmem:[%s302 + $0x630] sm:$0xff]
        %v710 = vld [vmem:[%s302 + $0x638] sm:$0xff]
        %v711 = vld [vmem:[%s302 + $0x640] sm:$0xff]
        %v712 = vld [vmem:[%s302 + $0x648] sm:$0xff]
        %v713 = vld [vmem:[%s302 + $0x650] sm:$0xff]
        %v714 = vld [vmem:[%s302 + $0x658] sm:$0xff]
        %v715 = vld [vmem:[%s302 + $0x660] sm:$0xff]
        %v716 = vld [vmem:[%s302 + $0x668] sm:$0xff]
        %v717 = vld [vmem:[%s302 + $0x670] sm:$0xff]
        %v718 = vld [vmem:[%s302 + $0x678] sm:$0xff]
        %v719 = vld [vmem:[%s302 + $0x680] sm:$0xff]
        %v720 = vld [vmem:[%s302 + $0x688] sm:$0xff]
        %v721 = vld [vmem:[%s302 + $0x690] sm:$0xff]
        %v722 = vld [vmem:[%s302 + $0x698] sm:$0xff]
        %v723 = vld [vmem:[%s302 + $0x6a0] sm:$0xff]
        %v724 = vld [vmem:[%s302 + $0x6a8] sm:$0xff]
        %v725 = vld [vmem:[%s302 + $0x6b0] sm:$0xff]
        %v726 = vld [vmem:[%s302 + $0x6b8] sm:$0xff]
        %v727 = vld [vmem:[%s302 + $0x6c0] sm:$0xff]
        %v728 = vld [vmem:[%s302 + $0x6c8] sm:$0xff]
        %v729 = vld [vmem:[%s302 + $0x6d0] sm:$0xff]
        %v730 = vld [vmem:[%s302 + $0x6d8] sm:$0xff]
        %v731 = vld [vmem:[%s302 + $0x6e0] sm:$0xff]
        %v732 = vld [vmem:[%s302 + $0x6e8] sm:$0xff]
        %v733 = vld [vmem:[%s302 + $0x6f0] sm:$0xff]
        %v734 = vld [vmem:[%s302 + $0x6f8] sm:$0xff]
        %v735 = vld [vmem:[%s302 + $0x700] sm:$0xff]
        %v736 = vld [vmem:[%s302 + $0x708] sm:$0xff]
        %v737 = vld [vmem:[%s302 + $0x710] sm:$0xff]
        %v738 = vld [vmem:[%s302 + $0x718] sm:$0xff]
        %v739 = vld [vmem:[%s302 + $0x720] sm:$0xff]
        %v740 = vld [vmem:[%s302 + $0x728] sm:$0xff]
        %v741 = vld [vmem:[%s302 + $0x730] sm:$0xff]
        %v742 = vld [vmem:[%s302 + $0x738] sm:$0xff]
        %v743 = vld [vmem:[%s302 + $0x740] sm:$0xff]
        %v744 = vld [vmem:[%s302 + $0x748] sm:$0xff]
        %v745 = vld [vmem:[%s302 + $0x750] sm:$0xff]
        %v746 = vld [vmem:[%s302 + $0x758] sm:$0xff]
        %v747 = vld [vmem:[%s302 + $0x760] sm:$0xff]
        %v748 = vld [vmem:[%s302 + $0x768] sm:$0xff]
        %v749 = vld [vmem:[%s302 + $0x770] sm:$0xff]
        %v750 = vld [vmem:[%s302 + $0x778] sm:$0xff]
        %v751 = vld [vmem:[%s302 + $0x780] sm:$0xff]
        %v752 = vld [vmem:[%s302 + $0x788] sm:$0xff]
        %v753 = vld [vmem:[%s302 + $0x790] sm:$0xff]
        %v754 = vld [vmem:[%s302 + $0x798] sm:$0xff]
        %v755 = vld [vmem:[%s302 + $0x7a0] sm:$0xff]
        %v756 = vld [vmem:[%s302 + $0x7a8] sm:$0xff]
        %v757 = vld [vmem:[%s302 + $0x7b0] sm:$0xff]
        %v758 = vld [vmem:[%s302 + $0x7b8] sm:$0xff]
        %v759 = vld [vmem:[%s302 + $0x7c0] sm:$0xff]
        %v760 = vld [vmem:[%s302 + $0x7c8] sm:$0xff]
        %v761 = vld [vmem:[%s302 + $0x7d0] sm:$0xff]
        %v762 = vld [vmem:[%s302 + $0x7d8] sm:$0xff]
        %v763 = vld [vmem:[%s302 + $0x7e0] sm:$0xff]
        %v764 = vld [vmem:[%s302 + $0x7e8] sm:$0xff]
        %v765 = vld [vmem:[%s302 + $0x7f0] sm:$0xff]
        %v766 = vld [vmem:[%s302 + $0x7f8] sm:$0xff]
        %v767 = vld [vmem:[%s311] sm:$0x3]
        %v769 = vlaneseq
        %v770 = vshrl.u32 %v769, 7
        %v771 = vsub.s32 0, %v770
        %v772 = vrot.slane %v767, %v771
        %v773 = vlaneseq
        %v774 = vshrl.u32 %v773, 7
        %v775 = vsub.s32 1, %v774
        %v776 = vrot.slane %v767, %v775
        %v787 = vunpack.c.l.b16 %v503
        %v788 = vunpack.c.h.b16 %v503
        %v789 = vunpack.c.l.b16 %v504
        %v790 = vunpack.c.h.b16 %v504
        %v791 = vunpack.c.l.b16 %v505
        %v792 = vunpack.c.h.b16 %v505
        %v793 = vunpack.c.l.b16 %v506
        %v794 = vunpack.c.h.b16 %v506
        %v795 = vunpack.c.l.b16 %v507
        %v796 = vunpack.c.h.b16 %v507
        %v797 = vunpack.c.l.b16 %v508
        %v798 = vunpack.c.h.b16 %v508
        %v799 = vunpack.c.l.b16 %v509
        %v800 = vunpack.c.h.b16 %v509
        %v801 = vunpack.c.l.b16 %v510
        %v802 = vunpack.c.h.b16 %v510
        %v803 = vpack.c.b16 %v787, %v787
        %v804 = vpack.c.b16 %v788, %v788
        %v805 = vpack.c.b16 %v789, %v789
        %v806 = vpack.c.b16 %v790, %v790
        %v807 = vpack.c.b16 %v791, %v791
        %v808 = vpack.c.b16 %v792, %v792
        %v809 = vpack.c.b16 %v793, %v793
        %v810 = vpack.c.b16 %v794, %v794
        %v811 = vpack.c.b16 %v795, %v795
        %v812 = vpack.c.b16 %v796, %v796
        %v813 = vpack.c.b16 %v797, %v797
        %v814 = vpack.c.b16 %v798, %v798
        %v815 = vpack.c.b16 %v799, %v799
        %v816 = vpack.c.b16 %v800, %v800
        %v817 = vpack.c.b16 %v801, %v801
        %v818 = vpack.c.b16 %v802, %v802
        %v1091 = vunpack.c.l.b16 %v511
        %v1092 = vunpack.c.h.b16 %v511
        %v1093 = vunpack.c.l.b16 %v512
        %v1094 = vunpack.c.h.b16 %v512
        %v1095 = vunpack.c.l.b16 %v513
        %v1096 = vunpack.c.h.b16 %v513
        %v1097 = vunpack.c.l.b16 %v514
        %v1098 = vunpack.c.h.b16 %v514
        %v1099 = vunpack.c.l.b16 %v515
        %v1100 = vunpack.c.h.b16 %v515
        %v1101 = vunpack.c.l.b16 %v516
        %v1102 = vunpack.c.h.b16 %v516
        %v1103 = vunpack.c.l.b16 %v517
        %v1104 = vunpack.c.h.b16 %v517
        %v1105 = vunpack.c.l.b16 %v518
        %v1106 = vunpack.c.h.b16 %v518
        %v1107 = vunpack.c.l.b16 %v519
        %v1108 = vunpack.c.h.b16 %v519
        %v1109 = vunpack.c.l.b16 %v520
        %v1110 = vunpack.c.h.b16 %v520
        %v1111 = vunpack.c.l.b16 %v521
        %v1112 = vunpack.c.h.b16 %v521
        %v1113 = vunpack.c.l.b16 %v522
        %v1114 = vunpack.c.h.b16 %v522
        %v1115 = vunpack.c.l.b16 %v523
        %v1116 = vunpack.c.h.b16 %v523
        %v1117 = vunpack.c.l.b16 %v524
        %v1118 = vunpack.c.h.b16 %v524
        %v1119 = vunpack.c.l.b16 %v525
        %v1120 = vunpack.c.h.b16 %v525
        %v1121 = vunpack.c.l.b16 %v526
        %v1122 = vunpack.c.h.b16 %v526
        %v1123 = vunpack.c.l.b16 %v527
        %v1124 = vunpack.c.h.b16 %v527
        %v1125 = vunpack.c.l.b16 %v528
        %v1126 = vunpack.c.h.b16 %v528
        %v1127 = vunpack.c.l.b16 %v529
        %v1128 = vunpack.c.h.b16 %v529
        %v1129 = vunpack.c.l.b16 %v530
        %v1130 = vunpack.c.h.b16 %v530
        %v1131 = vunpack.c.l.b16 %v531
        %v1132 = vunpack.c.h.b16 %v531
        %v1133 = vunpack.c.l.b16 %v532
        %v1134 = vunpack.c.h.b16 %v532
        %v1135 = vunpack.c.l.b16 %v533
        %v1136 = vunpack.c.h.b16 %v533
        %v1137 = vunpack.c.l.b16 %v534
        %v1138 = vunpack.c.h.b16 %v534
        %v1139 = vunpack.c.l.b16 %v535
        %v1140 = vunpack.c.h.b16 %v535
        %v1141 = vunpack.c.l.b16 %v536
        %v1142 = vunpack.c.h.b16 %v536
        %v1143 = vunpack.c.l.b16 %v537
        %v1144 = vunpack.c.h.b16 %v537
        %v1145 = vunpack.c.l.b16 %v538
        %v1146 = vunpack.c.h.b16 %v538
        %v1147 = vunpack.c.l.b16 %v539
        %v1148 = vunpack.c.h.b16 %v539
        %v1149 = vunpack.c.l.b16 %v540
        %v1150 = vunpack.c.h.b16 %v540
        %v1151 = vunpack.c.l.b16 %v541
        %v1152 = vunpack.c.h.b16 %v541
        %v1153 = vunpack.c.l.b16 %v542
        %v1154 = vunpack.c.h.b16 %v542
        %v1155 = vunpack.c.l.b16 %v543
        %v1156 = vunpack.c.h.b16 %v543
        %v1157 = vunpack.c.l.b16 %v544
        %v1158 = vunpack.c.h.b16 %v544
        %v1159 = vunpack.c.l.b16 %v545
        %v1160 = vunpack.c.h.b16 %v545
        %v1161 = vunpack.c.l.b16 %v546
        %v1162 = vunpack.c.h.b16 %v546
        %v1163 = vunpack.c.l.b16 %v547
        %v1164 = vunpack.c.h.b16 %v547
        %v1165 = vunpack.c.l.b16 %v548
        %v1166 = vunpack.c.h.b16 %v548
        %v1167 = vunpack.c.l.b16 %v549
        %v1168 = vunpack.c.h.b16 %v549
        %v1169 = vunpack.c.l.b16 %v550
        %v1170 = vunpack.c.h.b16 %v550
        %v1171 = vunpack.c.l.b16 %v551
        %v1172 = vunpack.c.h.b16 %v551
        %v1173 = vunpack.c.l.b16 %v552
        %v1174 = vunpack.c.h.b16 %v552
        %v1175 = vunpack.c.l.b16 %v553
        %v1176 = vunpack.c.h.b16 %v553
        %v1177 = vunpack.c.l.b16 %v554
        %v1178 = vunpack.c.h.b16 %v554
        %v1179 = vunpack.c.l.b16 %v555
        %v1180 = vunpack.c.h.b16 %v555
        %v1181 = vunpack.c.l.b16 %v556
        %v1182 = vunpack.c.h.b16 %v556
        %v1183 = vunpack.c.l.b16 %v557
        %v1184 = vunpack.c.h.b16 %v557
        %v1185 = vunpack.c.l.b16 %v558
        %v1186 = vunpack.c.h.b16 %v558
        %v1187 = vunpack.c.l.b16 %v559
        %v1188 = vunpack.c.h.b16 %v559
        %v1189 = vunpack.c.l.b16 %v560
        %v1190 = vunpack.c.h.b16 %v560
        %v1191 = vunpack.c.l.b16 %v561
        %v1192 = vunpack.c.h.b16 %v561
        %v1193 = vunpack.c.l.b16 %v562
        %v1194 = vunpack.c.h.b16 %v562
        %v1195 = vunpack.c.l.b16 %v563
        %v1196 = vunpack.c.h.b16 %v563
        %v1197 = vunpack.c.l.b16 %v564
        %v1198 = vunpack.c.h.b16 %v564
        %v1199 = vunpack.c.l.b16 %v565
        %v1200 = vunpack.c.h.b16 %v565
        %v1201 = vunpack.c.l.b16 %v566
        %v1202 = vunpack.c.h.b16 %v566
        %v1203 = vunpack.c.l.b16 %v567
        %v1204 = vunpack.c.h.b16 %v567
        %v1205 = vunpack.c.l.b16 %v568
        %v1206 = vunpack.c.h.b16 %v568
        %v1207 = vunpack.c.l.b16 %v569
        %v1208 = vunpack.c.h.b16 %v569
        %v1209 = vunpack.c.l.b16 %v570
        %v1210 = vunpack.c.h.b16 %v570
        %v1211 = vunpack.c.l.b16 %v571
        %v1212 = vunpack.c.h.b16 %v571
        %v1213 = vunpack.c.l.b16 %v572
        %v1214 = vunpack.c.h.b16 %v572
        %v1215 = vunpack.c.l.b16 %v573
        %v1216 = vunpack.c.h.b16 %v573
        %v1217 = vunpack.c.l.b16 %v574
        %v1218 = vunpack.c.h.b16 %v574
        %v1219 = vunpack.c.l.b16 %v575
        %v1220 = vunpack.c.h.b16 %v575
        %v1221 = vunpack.c.l.b16 %v576
        %v1222 = vunpack.c.h.b16 %v576
        %v1223 = vunpack.c.l.b16 %v577
        %v1224 = vunpack.c.h.b16 %v577
        %v1225 = vunpack.c.l.b16 %v578
        %v1226 = vunpack.c.h.b16 %v578
        %v1227 = vunpack.c.l.b16 %v579
        %v1228 = vunpack.c.h.b16 %v579
        %v1229 = vunpack.c.l.b16 %v580
        %v1230 = vunpack.c.h.b16 %v580
        %v1231 = vunpack.c.l.b16 %v581
        %v1232 = vunpack.c.h.b16 %v581
        %v1233 = vunpack.c.l.b16 %v582
        %v1234 = vunpack.c.h.b16 %v582
        %v1235 = vunpack.c.l.b16 %v583
        %v1236 = vunpack.c.h.b16 %v583
        %v1237 = vunpack.c.l.b16 %v584
        %v1238 = vunpack.c.h.b16 %v584
        %v1239 = vunpack.c.l.b16 %v585
        %v1240 = vunpack.c.h.b16 %v585
        %v1241 = vunpack.c.l.b16 %v586
        %v1242 = vunpack.c.h.b16 %v586
        %v1243 = vunpack.c.l.b16 %v587
        %v1244 = vunpack.c.h.b16 %v587
        %v1245 = vunpack.c.l.b16 %v588
        %v1246 = vunpack.c.h.b16 %v588
        %v1247 = vunpack.c.l.b16 %v589
        %v1248 = vunpack.c.h.b16 %v589
        %v1249 = vunpack.c.l.b16 %v590
        %v1250 = vunpack.c.h.b16 %v590
        %v1251 = vunpack.c.l.b16 %v591
        %v1252 = vunpack.c.h.b16 %v591
        %v1253 = vunpack.c.l.b16 %v592
        %v1254 = vunpack.c.h.b16 %v592
        %v1255 = vunpack.c.l.b16 %v593
        %v1256 = vunpack.c.h.b16 %v593
        %v1257 = vunpack.c.l.b16 %v594
        %v1258 = vunpack.c.h.b16 %v594
        %v1259 = vunpack.c.l.b16 %v595
        %v1260 = vunpack.c.h.b16 %v595
        %v1261 = vunpack.c.l.b16 %v596
        %v1262 = vunpack.c.h.b16 %v596
        %v1263 = vunpack.c.l.b16 %v597
        %v1264 = vunpack.c.h.b16 %v597
        %v1265 = vunpack.c.l.b16 %v598
        %v1266 = vunpack.c.h.b16 %v598
        %v1267 = vunpack.c.l.b16 %v599
        %v1268 = vunpack.c.h.b16 %v599
        %v1269 = vunpack.c.l.b16 %v600
        %v1270 = vunpack.c.h.b16 %v600
        %v1271 = vunpack.c.l.b16 %v601
        %v1272 = vunpack.c.h.b16 %v601
        %v1273 = vunpack.c.l.b16 %v602
        %v1274 = vunpack.c.h.b16 %v602
        %v1275 = vunpack.c.l.b16 %v603
        %v1276 = vunpack.c.h.b16 %v603
        %v1277 = vunpack.c.l.b16 %v604
        %v1278 = vunpack.c.h.b16 %v604
        %v1279 = vunpack.c.l.b16 %v605
        %v1280 = vunpack.c.h.b16 %v605
        %v1281 = vunpack.c.l.b16 %v606
        %v1282 = vunpack.c.h.b16 %v606
        %v1283 = vunpack.c.l.b16 %v607
        %v1284 = vunpack.c.h.b16 %v607
        %v1285 = vunpack.c.l.b16 %v608
        %v1286 = vunpack.c.h.b16 %v608
        %v1287 = vunpack.c.l.b16 %v609
        %v1288 = vunpack.c.h.b16 %v609
        %v1289 = vunpack.c.l.b16 %v610
        %v1290 = vunpack.c.h.b16 %v610
        %v1291 = vunpack.c.l.b16 %v611
        %v1292 = vunpack.c.h.b16 %v611
        %v1293 = vunpack.c.l.b16 %v612
        %v1294 = vunpack.c.h.b16 %v612
        %v1295 = vunpack.c.l.b16 %v613
        %v1296 = vunpack.c.h.b16 %v613
        %v1297 = vunpack.c.l.b16 %v614
        %v1298 = vunpack.c.h.b16 %v614
        %v1299 = vunpack.c.l.b16 %v615
        %v1300 = vunpack.c.h.b16 %v615
        %v1301 = vunpack.c.l.b16 %v616
        %v1302 = vunpack.c.h.b16 %v616
        %v1303 = vunpack.c.l.b16 %v617
        %v1304 = vunpack.c.h.b16 %v617
        %v1305 = vunpack.c.l.b16 %v618
        %v1306 = vunpack.c.h.b16 %v618
        %v1307 = vunpack.c.l.b16 %v619
        %v1308 = vunpack.c.h.b16 %v619
        %v1309 = vunpack.c.l.b16 %v620
        %v1310 = vunpack.c.h.b16 %v620
        %v1311 = vunpack.c.l.b16 %v621
        %v1312 = vunpack.c.h.b16 %v621
        %v1313 = vunpack.c.l.b16 %v622
        %v1314 = vunpack.c.h.b16 %v622
        %v1315 = vunpack.c.l.b16 %v623
        %v1316 = vunpack.c.h.b16 %v623
        %v1317 = vunpack.c.l.b16 %v624
        %v1318 = vunpack.c.h.b16 %v624
        %v1319 = vunpack.c.l.b16 %v625
        %v1320 = vunpack.c.h.b16 %v625
        %v1321 = vunpack.c.l.b16 %v626
        %v1322 = vunpack.c.h.b16 %v626
        %v1323 = vunpack.c.l.b16 %v627
        %v1324 = vunpack.c.h.b16 %v627
        %v1325 = vunpack.c.l.b16 %v628
        %v1326 = vunpack.c.h.b16 %v628
        %v1327 = vunpack.c.l.b16 %v629
        %v1328 = vunpack.c.h.b16 %v629
        %v1329 = vunpack.c.l.b16 %v630
        %v1330 = vunpack.c.h.b16 %v630
        %v1331 = vunpack.c.l.b16 %v631
        %v1332 = vunpack.c.h.b16 %v631
        %v1333 = vunpack.c.l.b16 %v632
        %v1334 = vunpack.c.h.b16 %v632
        %v1335 = vunpack.c.l.b16 %v633
        %v1336 = vunpack.c.h.b16 %v633
        %v1337 = vunpack.c.l.b16 %v634
        %v1338 = vunpack.c.h.b16 %v634
        %v1339 = vunpack.c.l.b16 %v635
        %v1340 = vunpack.c.h.b16 %v635
        %v1341 = vunpack.c.l.b16 %v636
        %v1342 = vunpack.c.h.b16 %v636
        %v1343 = vunpack.c.l.b16 %v637
        %v1344 = vunpack.c.h.b16 %v637
        %v1345 = vunpack.c.l.b16 %v638
        %v1346 = vunpack.c.h.b16 %v638
        %v1347 = vunpack.c.l.b16 %v639
        %v1348 = vunpack.c.h.b16 %v639
        %v1349 = vunpack.c.l.b16 %v640
        %v1350 = vunpack.c.h.b16 %v640
        %v1351 = vunpack.c.l.b16 %v641
        %v1352 = vunpack.c.h.b16 %v641
        %v1353 = vunpack.c.l.b16 %v642
        %v1354 = vunpack.c.h.b16 %v642
        %v1355 = vunpack.c.l.b16 %v643
        %v1356 = vunpack.c.h.b16 %v643
        %v1357 = vunpack.c.l.b16 %v644
        %v1358 = vunpack.c.h.b16 %v644
        %v1359 = vunpack.c.l.b16 %v645
        %v1360 = vunpack.c.h.b16 %v645
        %v1361 = vunpack.c.l.b16 %v646
        %v1362 = vunpack.c.h.b16 %v646
        %v1363 = vunpack.c.l.b16 %v647
        %v1364 = vunpack.c.h.b16 %v647
        %v1365 = vunpack.c.l.b16 %v648
        %v1366 = vunpack.c.h.b16 %v648
        %v1367 = vunpack.c.l.b16 %v649
        %v1368 = vunpack.c.h.b16 %v649
        %v1369 = vunpack.c.l.b16 %v650
        %v1370 = vunpack.c.h.b16 %v650
        %v1371 = vunpack.c.l.b16 %v651
        %v1372 = vunpack.c.h.b16 %v651
        %v1373 = vunpack.c.l.b16 %v652
        %v1374 = vunpack.c.h.b16 %v652
        %v1375 = vunpack.c.l.b16 %v653
        %v1376 = vunpack.c.h.b16 %v653
        %v1377 = vunpack.c.l.b16 %v654
        %v1378 = vunpack.c.h.b16 %v654
        %v1379 = vunpack.c.l.b16 %v655
        %v1380 = vunpack.c.h.b16 %v655
        %v1381 = vunpack.c.l.b16 %v656
        %v1382 = vunpack.c.h.b16 %v656
        %v1383 = vunpack.c.l.b16 %v657
        %v1384 = vunpack.c.h.b16 %v657
        %v1385 = vunpack.c.l.b16 %v658
        %v1386 = vunpack.c.h.b16 %v658
        %v1387 = vunpack.c.l.b16 %v659
        %v1388 = vunpack.c.h.b16 %v659
        %v1389 = vunpack.c.l.b16 %v660
        %v1390 = vunpack.c.h.b16 %v660
        %v1391 = vunpack.c.l.b16 %v661
        %v1392 = vunpack.c.h.b16 %v661
        %v1393 = vunpack.c.l.b16 %v662
        %v1394 = vunpack.c.h.b16 %v662
        %v1395 = vunpack.c.l.b16 %v663
        %v1396 = vunpack.c.h.b16 %v663
        %v1397 = vunpack.c.l.b16 %v664
        %v1398 = vunpack.c.h.b16 %v664
        %v1399 = vunpack.c.l.b16 %v665
        %v1400 = vunpack.c.h.b16 %v665
        %v1401 = vunpack.c.l.b16 %v666
        %v1402 = vunpack.c.h.b16 %v666
        %v1403 = vunpack.c.l.b16 %v667
        %v1404 = vunpack.c.h.b16 %v667
        %v1405 = vunpack.c.l.b16 %v668
        %v1406 = vunpack.c.h.b16 %v668
        %v1407 = vunpack.c.l.b16 %v669
        %v1408 = vunpack.c.h.b16 %v669
        %v1409 = vunpack.c.l.b16 %v670
        %v1410 = vunpack.c.h.b16 %v670
        %v1411 = vunpack.c.l.b16 %v671
        %v1412 = vunpack.c.h.b16 %v671
        %v1413 = vunpack.c.l.b16 %v672
        %v1414 = vunpack.c.h.b16 %v672
        %v1415 = vunpack.c.l.b16 %v673
        %v1416 = vunpack.c.h.b16 %v673
        %v1417 = vunpack.c.l.b16 %v674
        %v1418 = vunpack.c.h.b16 %v674
        %v1419 = vunpack.c.l.b16 %v675
        %v1420 = vunpack.c.h.b16 %v675
        %v1421 = vunpack.c.l.b16 %v676
        %v1422 = vunpack.c.h.b16 %v676
        %v1423 = vunpack.c.l.b16 %v677
        %v1424 = vunpack.c.h.b16 %v677
        %v1425 = vunpack.c.l.b16 %v678
        %v1426 = vunpack.c.h.b16 %v678
        %v1427 = vunpack.c.l.b16 %v679
        %v1428 = vunpack.c.h.b16 %v679
        %v1429 = vunpack.c.l.b16 %v680
        %v1430 = vunpack.c.h.b16 %v680
        %v1431 = vunpack.c.l.b16 %v681
        %v1432 = vunpack.c.h.b16 %v681
        %v1433 = vunpack.c.l.b16 %v682
        %v1434 = vunpack.c.h.b16 %v682
        %v1435 = vunpack.c.l.b16 %v683
        %v1436 = vunpack.c.h.b16 %v683
        %v1437 = vunpack.c.l.b16 %v684
        %v1438 = vunpack.c.h.b16 %v684
        %v1439 = vunpack.c.l.b16 %v685
        %v1440 = vunpack.c.h.b16 %v685
        %v1441 = vunpack.c.l.b16 %v686
        %v1442 = vunpack.c.h.b16 %v686
        %v1443 = vunpack.c.l.b16 %v687
        %v1444 = vunpack.c.h.b16 %v687
        %v1445 = vunpack.c.l.b16 %v688
        %v1446 = vunpack.c.h.b16 %v688
        %v1447 = vunpack.c.l.b16 %v689
        %v1448 = vunpack.c.h.b16 %v689
        %v1449 = vunpack.c.l.b16 %v690
        %v1450 = vunpack.c.h.b16 %v690
        %v1451 = vunpack.c.l.b16 %v691
        %v1452 = vunpack.c.h.b16 %v691
        %v1453 = vunpack.c.l.b16 %v692
        %v1454 = vunpack.c.h.b16 %v692
        %v1455 = vunpack.c.l.b16 %v693
        %v1456 = vunpack.c.h.b16 %v693
        %v1457 = vunpack.c.l.b16 %v694
        %v1458 = vunpack.c.h.b16 %v694
        %v1459 = vunpack.c.l.b16 %v695
        %v1460 = vunpack.c.h.b16 %v695
        %v1461 = vunpack.c.l.b16 %v696
        %v1462 = vunpack.c.h.b16 %v696
        %v1463 = vunpack.c.l.b16 %v697
        %v1464 = vunpack.c.h.b16 %v697
        %v1465 = vunpack.c.l.b16 %v698
        %v1466 = vunpack.c.h.b16 %v698
        %v1467 = vunpack.c.l.b16 %v699
        %v1468 = vunpack.c.h.b16 %v699
        %v1469 = vunpack.c.l.b16 %v700
        %v1470 = vunpack.c.h.b16 %v700
        %v1471 = vunpack.c.l.b16 %v701
        %v1472 = vunpack.c.h.b16 %v701
        %v1473 = vunpack.c.l.b16 %v702
        %v1474 = vunpack.c.h.b16 %v702
        %v1475 = vunpack.c.l.b16 %v703
        %v1476 = vunpack.c.h.b16 %v703
        %v1477 = vunpack.c.l.b16 %v704
        %v1478 = vunpack.c.h.b16 %v704
        %v1479 = vunpack.c.l.b16 %v705
        %v1480 = vunpack.c.h.b16 %v705
        %v1481 = vunpack.c.l.b16 %v706
        %v1482 = vunpack.c.h.b16 %v706
        %v1483 = vunpack.c.l.b16 %v707
        %v1484 = vunpack.c.h.b16 %v707
        %v1485 = vunpack.c.l.b16 %v708
        %v1486 = vunpack.c.h.b16 %v708
        %v1487 = vunpack.c.l.b16 %v709
        %v1488 = vunpack.c.h.b16 %v709
        %v1489 = vunpack.c.l.b16 %v710
        %v1490 = vunpack.c.h.b16 %v710
        %v1491 = vunpack.c.l.b16 %v711
        %v1492 = vunpack.c.h.b16 %v711
        %v1493 = vunpack.c.l.b16 %v712
        %v1494 = vunpack.c.h.b16 %v712
        %v1495 = vunpack.c.l.b16 %v713
        %v1496 = vunpack.c.h.b16 %v713
        %v1497 = vunpack.c.l.b16 %v714
        %v1498 = vunpack.c.h.b16 %v714
        %v1499 = vunpack.c.l.b16 %v715
        %v1500 = vunpack.c.h.b16 %v715
        %v1501 = vunpack.c.l.b16 %v716
        %v1502 = vunpack.c.h.b16 %v716
        %v1503 = vunpack.c.l.b16 %v717
        %v1504 = vunpack.c.h.b16 %v717
        %v1505 = vunpack.c.l.b16 %v718
        %v1506 = vunpack.c.h.b16 %v718
        %v1507 = vunpack.c.l.b16 %v719
        %v1508 = vunpack.c.h.b16 %v719
        %v1509 = vunpack.c.l.b16 %v720
        %v1510 = vunpack.c.h.b16 %v720
        %v1511 = vunpack.c.l.b16 %v721
        %v1512 = vunpack.c.h.b16 %v721
        %v1513 = vunpack.c.l.b16 %v722
        %v1514 = vunpack.c.h.b16 %v722
        %v1515 = vunpack.c.l.b16 %v723
        %v1516 = vunpack.c.h.b16 %v723
        %v1517 = vunpack.c.l.b16 %v724
        %v1518 = vunpack.c.h.b16 %v724
        %v1519 = vunpack.c.l.b16 %v725
        %v1520 = vunpack.c.h.b16 %v725
        %v1521 = vunpack.c.l.b16 %v726
        %v1522 = vunpack.c.h.b16 %v726
        %v1523 = vunpack.c.l.b16 %v727
        %v1524 = vunpack.c.h.b16 %v727
        %v1525 = vunpack.c.l.b16 %v728
        %v1526 = vunpack.c.h.b16 %v728
        %v1527 = vunpack.c.l.b16 %v729
        %v1528 = vunpack.c.h.b16 %v729
        %v1529 = vunpack.c.l.b16 %v730
        %v1530 = vunpack.c.h.b16 %v730
        %v1531 = vunpack.c.l.b16 %v731
        %v1532 = vunpack.c.h.b16 %v731
        %v1533 = vunpack.c.l.b16 %v732
        %v1534 = vunpack.c.h.b16 %v732
        %v1535 = vunpack.c.l.b16 %v733
        %v1536 = vunpack.c.h.b16 %v733
        %v1537 = vunpack.c.l.b16 %v734
        %v1538 = vunpack.c.h.b16 %v734
        %v1539 = vunpack.c.l.b16 %v735
        %v1540 = vunpack.c.h.b16 %v735
        %v1541 = vunpack.c.l.b16 %v736
        %v1542 = vunpack.c.h.b16 %v736
        %v1543 = vunpack.c.l.b16 %v737
        %v1544 = vunpack.c.h.b16 %v737
        %v1545 = vunpack.c.l.b16 %v738
        %v1546 = vunpack.c.h.b16 %v738
        %v1547 = vunpack.c.l.b16 %v739
        %v1548 = vunpack.c.h.b16 %v739
        %v1549 = vunpack.c.l.b16 %v740
        %v1550 = vunpack.c.h.b16 %v740
        %v1551 = vunpack.c.l.b16 %v741
        %v1552 = vunpack.c.h.b16 %v741
        %v1553 = vunpack.c.l.b16 %v742
        %v1554 = vunpack.c.h.b16 %v742
        %v1555 = vunpack.c.l.b16 %v743
        %v1556 = vunpack.c.h.b16 %v743
        %v1557 = vunpack.c.l.b16 %v744
        %v1558 = vunpack.c.h.b16 %v744
        %v1559 = vunpack.c.l.b16 %v745
        %v1560 = vunpack.c.h.b16 %v745
        %v1561 = vunpack.c.l.b16 %v746
        %v1562 = vunpack.c.h.b16 %v746
        %v1563 = vunpack.c.l.b16 %v747
        %v1564 = vunpack.c.h.b16 %v747
        %v1565 = vunpack.c.l.b16 %v748
        %v1566 = vunpack.c.h.b16 %v748
        %v1567 = vunpack.c.l.b16 %v749
        %v1568 = vunpack.c.h.b16 %v749
        %v1569 = vunpack.c.l.b16 %v750
        %v1570 = vunpack.c.h.b16 %v750
        %v1571 = vunpack.c.l.b16 %v751
        %v1572 = vunpack.c.h.b16 %v751
        %v1573 = vunpack.c.l.b16 %v752
        %v1574 = vunpack.c.h.b16 %v752
        %v1575 = vunpack.c.l.b16 %v753
        %v1576 = vunpack.c.h.b16 %v753
        %v1577 = vunpack.c.l.b16 %v754
        %v1578 = vunpack.c.h.b16 %v754
        %v1579 = vunpack.c.l.b16 %v755
        %v1580 = vunpack.c.h.b16 %v755
        %v1581 = vunpack.c.l.b16 %v756
        %v1582 = vunpack.c.h.b16 %v756
        %v1583 = vunpack.c.l.b16 %v757
        %v1584 = vunpack.c.h.b16 %v757
        %v1585 = vunpack.c.l.b16 %v758
        %v1586 = vunpack.c.h.b16 %v758
        %v1587 = vunpack.c.l.b16 %v759
        %v1588 = vunpack.c.h.b16 %v759
        %v1589 = vunpack.c.l.b16 %v760
        %v1590 = vunpack.c.h.b16 %v760
        %v1591 = vunpack.c.l.b16 %v761
        %v1592 = vunpack.c.h.b16 %v761
        %v1593 = vunpack.c.l.b16 %v762
        %v1594 = vunpack.c.h.b16 %v762
        %v1595 = vunpack.c.l.b16 %v763
        %v1596 = vunpack.c.h.b16 %v763
        %v1597 = vunpack.c.l.b16 %v764
        %v1598 = vunpack.c.h.b16 %v764
        %v1599 = vunpack.c.l.b16 %v765
        %v1600 = vunpack.c.h.b16 %v765
        %v1601 = vunpack.c.l.b16 %v766
        %v1602 = vunpack.c.h.b16 %v766
        %v1603 = vpack.c.b16 %v1093, %v1091
        %v1604 = vpack.c.b16 %v1094, %v1092
        %v1605 = vpack.c.b16 %v1097, %v1095
        %v1606 = vpack.c.b16 %v1098, %v1096
        %v1607 = vpack.c.b16 %v1101, %v1099
        %v1608 = vpack.c.b16 %v1102, %v1100
        %v1609 = vpack.c.b16 %v1105, %v1103
        %v1610 = vpack.c.b16 %v1106, %v1104
        %v1611 = vpack.c.b16 %v1109, %v1107
        %v1612 = vpack.c.b16 %v1110, %v1108
        %v1613 = vpack.c.b16 %v1113, %v1111
        %v1614 = vpack.c.b16 %v1114, %v1112
        %v1615 = vpack.c.b16 %v1117, %v1115
        %v1616 = vpack.c.b16 %v1118, %v1116
        %v1617 = vpack.c.b16 %v1121, %v1119
        %v1618 = vpack.c.b16 %v1122, %v1120
        %v1619 = vpack.c.b16 %v1125, %v1123
        %v1620 = vpack.c.b16 %v1126, %v1124
        %v1621 = vpack.c.b16 %v1129, %v1127
        %v1622 = vpack.c.b16 %v1130, %v1128
        %v1623 = vpack.c.b16 %v1133, %v1131
        %v1624 = vpack.c.b16 %v1134, %v1132
        %v1625 = vpack.c.b16 %v1137, %v1135
        %v1626 = vpack.c.b16 %v1138, %v1136
        %v1627 = vpack.c.b16 %v1141, %v1139
        %v1628 = vpack.c.b16 %v1142, %v1140
        %v1629 = vpack.c.b16 %v1145, %v1143
        %v1630 = vpack.c.b16 %v1146, %v1144
        %v1631 = vpack.c.b16 %v1149, %v1147
        %v1632 = vpack.c.b16 %v1150, %v1148
        %v1633 = vpack.c.b16 %v1153, %v1151
        %v1634 = vpack.c.b16 %v1154, %v1152
        %v1635 = vpack.c.b16 %v1157, %v1155
        %v1636 = vpack.c.b16 %v1158, %v1156
        %v1637 = vpack.c.b16 %v1161, %v1159
        %v1638 = vpack.c.b16 %v1162, %v1160
        %v1639 = vpack.c.b16 %v1165, %v1163
        %v1640 = vpack.c.b16 %v1166, %v1164
        %v1641 = vpack.c.b16 %v1169, %v1167
        %v1642 = vpack.c.b16 %v1170, %v1168
        %v1643 = vpack.c.b16 %v1173, %v1171
        %v1644 = vpack.c.b16 %v1174, %v1172
        %v1645 = vpack.c.b16 %v1177, %v1175
        %v1646 = vpack.c.b16 %v1178, %v1176
        %v1647 = vpack.c.b16 %v1181, %v1179
        %v1648 = vpack.c.b16 %v1182, %v1180
        %v1649 = vpack.c.b16 %v1185, %v1183
        %v1650 = vpack.c.b16 %v1186, %v1184
        %v1651 = vpack.c.b16 %v1189, %v1187
        %v1652 = vpack.c.b16 %v1190, %v1188
        %v1653 = vpack.c.b16 %v1193, %v1191
        %v1654 = vpack.c.b16 %v1194, %v1192
        %v1655 = vpack.c.b16 %v1197, %v1195
        %v1656 = vpack.c.b16 %v1198, %v1196
        %v1657 = vpack.c.b16 %v1201, %v1199
        %v1658 = vpack.c.b16 %v1202, %v1200
        %v1659 = vpack.c.b16 %v1205, %v1203
        %v1660 = vpack.c.b16 %v1206, %v1204
        %v1661 = vpack.c.b16 %v1209, %v1207
        %v1662 = vpack.c.b16 %v1210, %v1208
        %v1663 = vpack.c.b16 %v1213, %v1211
        %v1664 = vpack.c.b16 %v1214, %v1212
        %v1665 = vpack.c.b16 %v1217, %v1215
        %v1666 = vpack.c.b16 %v1218, %v1216
        %v1667 = vpack.c.b16 %v1221, %v1219
        %v1668 = vpack.c.b16 %v1222, %v1220
        %v1669 = vpack.c.b16 %v1225, %v1223
        %v1670 = vpack.c.b16 %v1226, %v1224
        %v1671 = vpack.c.b16 %v1229, %v1227
        %v1672 = vpack.c.b16 %v1230, %v1228
        %v1673 = vpack.c.b16 %v1233, %v1231
        %v1674 = vpack.c.b16 %v1234, %v1232
        %v1675 = vpack.c.b16 %v1237, %v1235
        %v1676 = vpack.c.b16 %v1238, %v1236
        %v1677 = vpack.c.b16 %v1241, %v1239
        %v1678 = vpack.c.b16 %v1242, %v1240
        %v1679 = vpack.c.b16 %v1245, %v1243
        %v1680 = vpack.c.b16 %v1246, %v1244
        %v1681 = vpack.c.b16 %v1249, %v1247
        %v1682 = vpack.c.b16 %v1250, %v1248
        %v1683 = vpack.c.b16 %v1253, %v1251
        %v1684 = vpack.c.b16 %v1254, %v1252
        %v1685 = vpack.c.b16 %v1257, %v1255
        %v1686 = vpack.c.b16 %v1258, %v1256
        %v1687 = vpack.c.b16 %v1261, %v1259
        %v1688 = vpack.c.b16 %v1262, %v1260
        %v1689 = vpack.c.b16 %v1265, %v1263
        %v1690 = vpack.c.b16 %v1266, %v1264
        %v1691 = vpack.c.b16 %v1269, %v1267
        %v1692 = vpack.c.b16 %v1270, %v1268
        %v1693 = vpack.c.b16 %v1273, %v1271
        %v1694 = vpack.c.b16 %v1274, %v1272
        %v1695 = vpack.c.b16 %v1277, %v1275
        %v1696 = vpack.c.b16 %v1278, %v1276
        %v1697 = vpack.c.b16 %v1281, %v1279
        %v1698 = vpack.c.b16 %v1282, %v1280
        %v1699 = vpack.c.b16 %v1285, %v1283
        %v1700 = vpack.c.b16 %v1286, %v1284
        %v1701 = vpack.c.b16 %v1289, %v1287
        %v1702 = vpack.c.b16 %v1290, %v1288
        %v1703 = vpack.c.b16 %v1293, %v1291
        %v1704 = vpack.c.b16 %v1294, %v1292
        %v1705 = vpack.c.b16 %v1297, %v1295
        %v1706 = vpack.c.b16 %v1298, %v1296
        %v1707 = vpack.c.b16 %v1301, %v1299
        %v1708 = vpack.c.b16 %v1302, %v1300
        %v1709 = vpack.c.b16 %v1305, %v1303
        %v1710 = vpack.c.b16 %v1306, %v1304
        %v1711 = vpack.c.b16 %v1309, %v1307
        %v1712 = vpack.c.b16 %v1310, %v1308
        %v1713 = vpack.c.b16 %v1313, %v1311
        %v1714 = vpack.c.b16 %v1314, %v1312
        %v1715 = vpack.c.b16 %v1317, %v1315
        %v1716 = vpack.c.b16 %v1318, %v1316
        %v1717 = vpack.c.b16 %v1321, %v1319
        %v1718 = vpack.c.b16 %v1322, %v1320
        %v1719 = vpack.c.b16 %v1325, %v1323
        %v1720 = vpack.c.b16 %v1326, %v1324
        %v1721 = vpack.c.b16 %v1329, %v1327
        %v1722 = vpack.c.b16 %v1330, %v1328
        %v1723 = vpack.c.b16 %v1333, %v1331
        %v1724 = vpack.c.b16 %v1334, %v1332
        %v1725 = vpack.c.b16 %v1337, %v1335
        %v1726 = vpack.c.b16 %v1338, %v1336
        %v1727 = vpack.c.b16 %v1341, %v1339
        %v1728 = vpack.c.b16 %v1342, %v1340
        %v1729 = vpack.c.b16 %v1345, %v1343
        %v1730 = vpack.c.b16 %v1346, %v1344
        %v1731 = vpack.c.b16 %v1349, %v1347
        %v1732 = vpack.c.b16 %v1350, %v1348
        %v1733 = vpack.c.b16 %v1353, %v1351
        %v1734 = vpack.c.b16 %v1354, %v1352
        %v1735 = vpack.c.b16 %v1357, %v1355
        %v1736 = vpack.c.b16 %v1358, %v1356
        %v1737 = vpack.c.b16 %v1361, %v1359
        %v1738 = vpack.c.b16 %v1362, %v1360
        %v1739 = vpack.c.b16 %v1365, %v1363
        %v1740 = vpack.c.b16 %v1366, %v1364
        %v1741 = vpack.c.b16 %v1369, %v1367
        %v1742 = vpack.c.b16 %v1370, %v1368
        %v1743 = vpack.c.b16 %v1373, %v1371
        %v1744 = vpack.c.b16 %v1374, %v1372
        %v1745 = vpack.c.b16 %v1377, %v1375
        %v1746 = vpack.c.b16 %v1378, %v1376
        %v1747 = vpack.c.b16 %v1381, %v1379
        %v1748 = vpack.c.b16 %v1382, %v1380
        %v1749 = vpack.c.b16 %v1385, %v1383
        %v1750 = vpack.c.b16 %v1386, %v1384
        %v1751 = vpack.c.b16 %v1389, %v1387
        %v1752 = vpack.c.b16 %v1390, %v1388
        %v1753 = vpack.c.b16 %v1393, %v1391
        %v1754 = vpack.c.b16 %v1394, %v1392
        %v1755 = vpack.c.b16 %v1397, %v1395
        %v1756 = vpack.c.b16 %v1398, %v1396
        %v1757 = vpack.c.b16 %v1401, %v1399
        %v1758 = vpack.c.b16 %v1402, %v1400
        %v1759 = vpack.c.b16 %v1405, %v1403
        %v1760 = vpack.c.b16 %v1406, %v1404
        %v1761 = vpack.c.b16 %v1409, %v1407
        %v1762 = vpack.c.b16 %v1410, %v1408
        %v1763 = vpack.c.b16 %v1413, %v1411
        %v1764 = vpack.c.b16 %v1414, %v1412
        %v1765 = vpack.c.b16 %v1417, %v1415
        %v1766 = vpack.c.b16 %v1418, %v1416
        %v1767 = vpack.c.b16 %v1421, %v1419
        %v1768 = vpack.c.b16 %v1422, %v1420
        %v1769 = vpack.c.b16 %v1425, %v1423
        %v1770 = vpack.c.b16 %v1426, %v1424
        %v1771 = vpack.c.b16 %v1429, %v1427
        %v1772 = vpack.c.b16 %v1430, %v1428
        %v1773 = vpack.c.b16 %v1433, %v1431
        %v1774 = vpack.c.b16 %v1434, %v1432
        %v1775 = vpack.c.b16 %v1437, %v1435
        %v1776 = vpack.c.b16 %v1438, %v1436
        %v1777 = vpack.c.b16 %v1441, %v1439
        %v1778 = vpack.c.b16 %v1442, %v1440
        %v1779 = vpack.c.b16 %v1445, %v1443
        %v1780 = vpack.c.b16 %v1446, %v1444
        %v1781 = vpack.c.b16 %v1449, %v1447
        %v1782 = vpack.c.b16 %v1450, %v1448
        %v1783 = vpack.c.b16 %v1453, %v1451
        %v1784 = vpack.c.b16 %v1454, %v1452
        %v1785 = vpack.c.b16 %v1457, %v1455
        %v1786 = vpack.c.b16 %v1458, %v1456
        %v1787 = vpack.c.b16 %v1461, %v1459
        %v1788 = vpack.c.b16 %v1462, %v1460
        %v1789 = vpack.c.b16 %v1465, %v1463
        %v1790 = vpack.c.b16 %v1466, %v1464
        %v1791 = vpack.c.b16 %v1469, %v1467
        %v1792 = vpack.c.b16 %v1470, %v1468
        %v1793 = vpack.c.b16 %v1473, %v1471
        %v1794 = vpack.c.b16 %v1474, %v1472
        %v1795 = vpack.c.b16 %v1477, %v1475
        %v1796 = vpack.c.b16 %v1478, %v1476
        %v1797 = vpack.c.b16 %v1481, %v1479
        %v1798 = vpack.c.b16 %v1482, %v1480
        %v1799 = vpack.c.b16 %v1485, %v1483
        %v1800 = vpack.c.b16 %v1486, %v1484
        %v1801 = vpack.c.b16 %v1489, %v1487
        %v1802 = vpack.c.b16 %v1490, %v1488
        %v1803 = vpack.c.b16 %v1493, %v1491
        %v1804 = vpack.c.b16 %v1494, %v1492
        %v1805 = vpack.c.b16 %v1497, %v1495
        %v1806 = vpack.c.b16 %v1498, %v1496
        %v1807 = vpack.c.b16 %v1501, %v1499
        %v1808 = vpack.c.b16 %v1502, %v1500
        %v1809 = vpack.c.b16 %v1505, %v1503
        %v1810 = vpack.c.b16 %v1506, %v1504
        %v1811 = vpack.c.b16 %v1509, %v1507
        %v1812 = vpack.c.b16 %v1510, %v1508
        %v1813 = vpack.c.b16 %v1513, %v1511
        %v1814 = vpack.c.b16 %v1514, %v1512
        %v1815 = vpack.c.b16 %v1517, %v1515
        %v1816 = vpack.c.b16 %v1518, %v1516
        %v1817 = vpack.c.b16 %v1521, %v1519
        %v1818 = vpack.c.b16 %v1522, %v1520
        %v1819 = vpack.c.b16 %v1525, %v1523
        %v1820 = vpack.c.b16 %v1526, %v1524
        %v1821 = vpack.c.b16 %v1529, %v1527
        %v1822 = vpack.c.b16 %v1530, %v1528
        %v1823 = vpack.c.b16 %v1533, %v1531
        %v1824 = vpack.c.b16 %v1534, %v1532
        %v1825 = vpack.c.b16 %v1537, %v1535
        %v1826 = vpack.c.b16 %v1538, %v1536
        %v1827 = vpack.c.b16 %v1541, %v1539
        %v1828 = vpack.c.b16 %v1542, %v1540
        %v1829 = vpack.c.b16 %v1545, %v1543
        %v1830 = vpack.c.b16 %v1546, %v1544
        %v1831 = vpack.c.b16 %v1549, %v1547
        %v1832 = vpack.c.b16 %v1550, %v1548
        %v1833 = vpack.c.b16 %v1553, %v1551
        %v1834 = vpack.c.b16 %v1554, %v1552
        %v1835 = vpack.c.b16 %v1557, %v1555
        %v1836 = vpack.c.b16 %v1558, %v1556
        %v1837 = vpack.c.b16 %v1561, %v1559
        %v1838 = vpack.c.b16 %v1562, %v1560
        %v1839 = vpack.c.b16 %v1565, %v1563
        %v1840 = vpack.c.b16 %v1566, %v1564
        %v1841 = vpack.c.b16 %v1569, %v1567
        %v1842 = vpack.c.b16 %v1570, %v1568
        %v1843 = vpack.c.b16 %v1573, %v1571
        %v1844 = vpack.c.b16 %v1574, %v1572
        %v1845 = vpack.c.b16 %v1577, %v1575
        %v1846 = vpack.c.b16 %v1578, %v1576
        %v1847 = vpack.c.b16 %v1581, %v1579
        %v1848 = vpack.c.b16 %v1582, %v1580
        %v1849 = vpack.c.b16 %v1585, %v1583
        %v1850 = vpack.c.b16 %v1586, %v1584
        %v1851 = vpack.c.b16 %v1589, %v1587
        %v1852 = vpack.c.b16 %v1590, %v1588
        %v1853 = vpack.c.b16 %v1593, %v1591
        %v1854 = vpack.c.b16 %v1594, %v1592
        %v1855 = vpack.c.b16 %v1597, %v1595
        %v1856 = vpack.c.b16 %v1598, %v1596
        %v1857 = vpack.c.b16 %v1601, %v1599
        %v1858 = vpack.c.b16 %v1602, %v1600
        %2115 = vmatprep.subr.bf16.mxu0 %v1618
        %2116 = vmatpush1.bf16.msra.mxu0 %v1617
        %2117 = vmatprep.subr.bf16.mxu0 %v1616
        %2118 = vmatpush1.bf16.msra.mxu0 %v1615
        %2119 = vmatprep.subr.bf16.mxu0 %v1614
        %2120 = vmatpush1.bf16.msra.mxu0 %v1613
        %2121 = vmatprep.subr.bf16.mxu0 %v1612
        %2122 = vmatpush1.bf16.msra.mxu0 %v1611
        %2123 = vmatprep.subr.bf16.mxu0 %v1610
        %2124 = vmatpush1.bf16.msra.mxu0 %v1609
        %2125 = vmatprep.subr.bf16.mxu0 %v1608
        %2126 = vmatpush1.bf16.msra.mxu0 %v1607
        %2127 = vmatprep.subr.bf16.mxu0 %v1606
        %2128 = vmatpush1.bf16.msra.mxu0 %v1605
        %2129 = vmatprep.subr.bf16.mxu0 %v1604
        %2130 = vmatpush1.bf16.msra.mxu0 %v1603
        %2131 = vmatprep.subr.bf16.mxu0 %v1634
        %2132 = vmatpush2.bf16.msra.mxu0 %v1633
        %2133 = vmatprep.subr.bf16.mxu0 %v1632
        %2134 = vmatpush2.bf16.msra.mxu0 %v1631
        %2135 = vmatprep.subr.bf16.mxu0 %v1630
        %2136 = vmatpush2.bf16.msra.mxu0 %v1629
        %2137 = vmatprep.subr.bf16.mxu0 %v1628
        %2138 = vmatpush2.bf16.msra.mxu0 %v1627
        %2139 = vmatprep.subr.bf16.mxu0 %v1626
        %2140 = vmatpush2.bf16.msra.mxu0 %v1625
        %2141 = vmatprep.subr.bf16.mxu0 %v1624
        %2142 = vmatpush2.bf16.msra.mxu0 %v1623
        %2143 = vmatprep.subr.bf16.mxu0 %v1622
        %2144 = vmatpush2.bf16.msra.mxu0 %v1621
        %2145 = vmatprep.subr.bf16.mxu0 %v1620
        %2146 = vmatpush2.bf16.msra.mxu0 %v1619
        %2147 = vmatprep.mubr.bf16.mxu0 %v804
        %2148 = vmatmul.mubr.bf16.gmra.mxu0 %v803
        %v2149 = vpop.f32.mrf.mxu0
        %v2150 = vadd.f32 %v772, %v2149
        %v2151 = vpop.f32.mrf.mxu0
        %v2152 = vadd.f32 %v776, %v2151
        %v2153 = vpop.f32.mrf.mxu0
        %v2154 = vpop.f32.mrf.mxu0
        %2155 = vdwg.mxu0
        %2156 = vmatprep.subr.bf16.mxu0 %v1650
        %2157 = vmatpush1.bf16.msra.mxu0 %v1649
        %2158 = vmatprep.subr.bf16.mxu0 %v1648
        %2159 = vmatpush1.bf16.msra.mxu0 %v1647
        %2160 = vmatprep.subr.bf16.mxu0 %v1646
        %2161 = vmatpush1.bf16.msra.mxu0 %v1645
        %2162 = vmatprep.subr.bf16.mxu0 %v1644
        %2163 = vmatpush1.bf16.msra.mxu0 %v1643
        %2164 = vmatprep.subr.bf16.mxu0 %v1642
        %2165 = vmatpush1.bf16.msra.mxu0 %v1641
        %2166 = vmatprep.subr.bf16.mxu0 %v1640
        %2167 = vmatpush1.bf16.msra.mxu0 %v1639
        %2168 = vmatprep.subr.bf16.mxu0 %v1638
        %2169 = vmatpush1.bf16.msra.mxu0 %v1637
        %2170 = vmatprep.subr.bf16.mxu0 %v1636
        %2171 = vmatpush1.bf16.msra.mxu0 %v1635
        %2172 = vmatprep.subr.bf16.mxu0 %v1666
        %2173 = vmatpush2.bf16.msra.mxu0 %v1665
        %2174 = vmatprep.subr.bf16.mxu0 %v1664
        %2175 = vmatpush2.bf16.msra.mxu0 %v1663
        %2176 = vmatprep.subr.bf16.mxu0 %v1662
        %2177 = vmatpush2.bf16.msra.mxu0 %v1661
        %2178 = vmatprep.subr.bf16.mxu0 %v1660
        %2179 = vmatpush2.bf16.msra.mxu0 %v1659
        %2180 = vmatprep.subr.bf16.mxu0 %v1658
        %2181 = vmatpush2.bf16.msra.mxu0 %v1657
        %2182 = vmatprep.subr.bf16.mxu0 %v1656
        %2183 = vmatpush2.bf16.msra.mxu0 %v1655
        %2184 = vmatprep.subr.bf16.mxu0 %v1654
        %2185 = vmatpush2.bf16.msra.mxu0 %v1653
        %2186 = vmatprep.subr.bf16.mxu0 %v1652
        %2187 = vmatpush2.bf16.msra.mxu0 %v1651
        %2188 = vmatprep.mubr.bf16.mxu0 %v806
        %2189 = vmatmul.mubr.bf16.gmra.mxu0 %v805
        %v2190 = vpop.f32.mrf.mxu0
        %v2191 = vadd.f32 %v2150, %v2190
        %v2192 = vpop.f32.mrf.mxu0
        %v2193 = vadd.f32 %v2152, %v2192
        %v2194 = vpop.f32.mrf.mxu0
        %v2195 = vpop.f32.mrf.mxu0
        %2196 = vdwg.mxu0
        %2197 = vmatprep.subr.bf16.mxu0 %v1682
        %2198 = vmatpush1.bf16.msra.mxu0 %v1681
        %2199 = vmatprep.subr.bf16.mxu0 %v1680
        %2200 = vmatpush1.bf16.msra.mxu0 %v1679
        %2201 = vmatprep.subr.bf16.mxu0 %v1678
        %2202 = vmatpush1.bf16.msra.mxu0 %v1677
        %2203 = vmatprep.subr.bf16.mxu0 %v1676
        %2204 = vmatpush1.bf16.msra.mxu0 %v1675
        %2205 = vmatprep.subr.bf16.mxu0 %v1674
        %2206 = vmatpush1.bf16.msra.mxu0 %v1673
        %2207 = vmatprep.subr.bf16.mxu0 %v1672
        %2208 = vmatpush1.bf16.msra.mxu0 %v1671
        %2209 = vmatprep.subr.bf16.mxu0 %v1670
        %2210 = vmatpush1.bf16.msra.mxu0 %v1669
        %2211 = vmatprep.subr.bf16.mxu0 %v1668
        %2212 = vmatpush1.bf16.msra.mxu0 %v1667
        %2213 = vmatprep.subr.bf16.mxu0 %v1698
        %2214 = vmatpush2.bf16.msra.mxu0 %v1697
        %2215 = vmatprep.subr.bf16.mxu0 %v1696
        %2216 = vmatpush2.bf16.msra.mxu0 %v1695
        %2217 = vmatprep.subr.bf16.mxu0 %v1694
        %2218 = vmatpush2.bf16.msra.mxu0 %v1693
        %2219 = vmatprep.subr.bf16.mxu0 %v1692
        %2220 = vmatpush2.bf16.msra.mxu0 %v1691
        %2221 = vmatprep.subr.bf16.mxu0 %v1690
        %2222 = vmatpush2.bf16.msra.mxu0 %v1689
        %2223 = vmatprep.subr.bf16.mxu0 %v1688
        %2224 = vmatpush2.bf16.msra.mxu0 %v1687
        %2225 = vmatprep.subr.bf16.mxu0 %v1686
        %2226 = vmatpush2.bf16.msra.mxu0 %v1685
        %2227 = vmatprep.subr.bf16.mxu0 %v1684
        %2228 = vmatpush2.bf16.msra.mxu0 %v1683
        %2229 = vmatprep.mubr.bf16.mxu0 %v808
        %2230 = vmatmul.mubr.bf16.gmra.mxu0 %v807
        %v2231 = vpop.f32.mrf.mxu0
        %v2232 = vadd.f32 %v2191, %v2231
        %v2233 = vpop.f32.mrf.mxu0
        %v2234 = vadd.f32 %v2193, %v2233
        %v2235 = vpop.f32.mrf.mxu0
        %v2236 = vpop.f32.mrf.mxu0
        %2237 = vdwg.mxu0
        %2238 = vmatprep.subr.bf16.mxu0 %v1714
        %2239 = vmatpush1.bf16.msra.mxu0 %v1713
        %2240 = vmatprep.subr.bf16.mxu0 %v1712
        %2241 = vmatpush1.bf16.msra.mxu0 %v1711
        %2242 = vmatprep.subr.bf16.mxu0 %v1710
        %2243 = vmatpush1.bf16.msra.mxu0 %v1709
        %2244 = vmatprep.subr.bf16.mxu0 %v1708
        %2245 = vmatpush1.bf16.msra.mxu0 %v1707
        %2246 = vmatprep.subr.bf16.mxu0 %v1706
        %2247 = vmatpush1.bf16.msra.mxu0 %v1705
        %2248 = vmatprep.subr.bf16.mxu0 %v1704
        %2249 = vmatpush1.bf16.msra.mxu0 %v1703
        %2250 = vmatprep.subr.bf16.mxu0 %v1702
        %2251 = vmatpush1.bf16.msra.mxu0 %v1701
        %2252 = vmatprep.subr.bf16.mxu0 %v1700
        %2253 = vmatpush1.bf16.msra.mxu0 %v1699
        %2254 = vmatprep.subr.bf16.mxu0 %v1730
        %2255 = vmatpush2.bf16.msra.mxu0 %v1729
        %2256 = vmatprep.subr.bf16.mxu0 %v1728
        %2257 = vmatpush2.bf16.msra.mxu0 %v1727
        %2258 = vmatprep.subr.bf16.mxu0 %v1726
        %2259 = vmatpush2.bf16.msra.mxu0 %v1725
        %2260 = vmatprep.subr.bf16.mxu0 %v1724
        %2261 = vmatpush2.bf16.msra.mxu0 %v1723
        %2262 = vmatprep.subr.bf16.mxu0 %v1722
        %2263 = vmatpush2.bf16.msra.mxu0 %v1721
        %2264 = vmatprep.subr.bf16.mxu0 %v1720
        %2265 = vmatpush2.bf16.msra.mxu0 %v1719
        %2266 = vmatprep.subr.bf16.mxu0 %v1718
        %2267 = vmatpush2.bf16.msra.mxu0 %v1717
        %2268 = vmatprep.subr.bf16.mxu0 %v1716
        %2269 = vmatpush2.bf16.msra.mxu0 %v1715
        %2270 = vmatprep.mubr.bf16.mxu0 %v810
        %2271 = vmatmul.mubr.bf16.gmra.mxu0 %v809
        %v2272 = vpop.f32.mrf.mxu0
        %v2273 = vadd.f32 %v2232, %v2272
        %v2274 = vpop.f32.mrf.mxu0
        %v2275 = vadd.f32 %v2234, %v2274
        %v2276 = vpop.f32.mrf.mxu0
        %v2277 = vpop.f32.mrf.mxu0
        %2278 = vdwg.mxu0
        %2279 = vmatprep.subr.bf16.mxu0 %v1746
        %2280 = vmatpush1.bf16.msra.mxu0 %v1745
        %2281 = vmatprep.subr.bf16.mxu0 %v1744
        %2282 = vmatpush1.bf16.msra.mxu0 %v1743
        %2283 = vmatprep.subr.bf16.mxu0 %v1742
        %2284 = vmatpush1.bf16.msra.mxu0 %v1741
        %2285 = vmatprep.subr.bf16.mxu0 %v1740
        %2286 = vmatpush1.bf16.msra.mxu0 %v1739
        %2287 = vmatprep.subr.bf16.mxu0 %v1738
        %2288 = vmatpush1.bf16.msra.mxu0 %v1737
        %2289 = vmatprep.subr.bf16.mxu0 %v1736
        %2290 = vmatpush1.bf16.msra.mxu0 %v1735
        %2291 = vmatprep.subr.bf16.mxu0 %v1734
        %2292 = vmatpush1.bf16.msra.mxu0 %v1733
        %2293 = vmatprep.subr.bf16.mxu0 %v1732
        %2294 = vmatpush1.bf16.msra.mxu0 %v1731
        %2295 = vmatprep.subr.bf16.mxu0 %v1762
        %2296 = vmatpush2.bf16.msra.mxu0 %v1761
        %2297 = vmatprep.subr.bf16.mxu0 %v1760
        %2298 = vmatpush2.bf16.msra.mxu0 %v1759
        %2299 = vmatprep.subr.bf16.mxu0 %v1758
        %2300 = vmatpush2.bf16.msra.mxu0 %v1757
        %2301 = vmatprep.subr.bf16.mxu0 %v1756
        %2302 = vmatpush2.bf16.msra.mxu0 %v1755
        %2303 = vmatprep.subr.bf16.mxu0 %v1754
        %2304 = vmatpush2.bf16.msra.mxu0 %v1753
        %2305 = vmatprep.subr.bf16.mxu0 %v1752
        %2306 = vmatpush2.bf16.msra.mxu0 %v1751
        %2307 = vmatprep.subr.bf16.mxu0 %v1750
        %2308 = vmatpush2.bf16.msra.mxu0 %v1749
        %2309 = vmatprep.subr.bf16.mxu0 %v1748
        %2310 = vmatpush2.bf16.msra.mxu0 %v1747
        %2311 = vmatprep.mubr.bf16.mxu0 %v812
        %2312 = vmatmul.mubr.bf16.gmra.mxu0 %v811
        %v2313 = vpop.f32.mrf.mxu0
        %v2314 = vadd.f32 %v2273, %v2313
        %v2315 = vpop.f32.mrf.mxu0
        %v2316 = vadd.f32 %v2275, %v2315
        %v2317 = vpop.f32.mrf.mxu0
        %v2318 = vpop.f32.mrf.mxu0
        %2319 = vdwg.mxu0
        %2320 = vmatprep.subr.bf16.mxu0 %v1778
        %2321 = vmatpush1.bf16.msra.mxu0 %v1777
        %2322 = vmatprep.subr.bf16.mxu0 %v1776
        %2323 = vmatpush1.bf16.msra.mxu0 %v1775
        %2324 = vmatprep.subr.bf16.mxu0 %v1774
        %2325 = vmatpush1.bf16.msra.mxu0 %v1773
        %2326 = vmatprep.subr.bf16.mxu0 %v1772
        %2327 = vmatpush1.bf16.msra.mxu0 %v1771
        %2328 = vmatprep.subr.bf16.mxu0 %v1770
        %2329 = vmatpush1.bf16.msra.mxu0 %v1769
        %2330 = vmatprep.subr.bf16.mxu0 %v1768
        %2331 = vmatpush1.bf16.msra.mxu0 %v1767
        %2332 = vmatprep.subr.bf16.mxu0 %v1766
        %2333 = vmatpush1.bf16.msra.mxu0 %v1765
        %2334 = vmatprep.subr.bf16.mxu0 %v1764
        %2335 = vmatpush1.bf16.msra.mxu0 %v1763
        %2336 = vmatprep.subr.bf16.mxu0 %v1794
        %2337 = vmatpush2.bf16.msra.mxu0 %v1793
        %2338 = vmatprep.subr.bf16.mxu0 %v1792
        %2339 = vmatpush2.bf16.msra.mxu0 %v1791
        %2340 = vmatprep.subr.bf16.mxu0 %v1790
        %2341 = vmatpush2.bf16.msra.mxu0 %v1789
        %2342 = vmatprep.subr.bf16.mxu0 %v1788
        %2343 = vmatpush2.bf16.msra.mxu0 %v1787
        %2344 = vmatprep.subr.bf16.mxu0 %v1786
        %2345 = vmatpush2.bf16.msra.mxu0 %v1785
        %2346 = vmatprep.subr.bf16.mxu0 %v1784
        %2347 = vmatpush2.bf16.msra.mxu0 %v1783
        %2348 = vmatprep.subr.bf16.mxu0 %v1782
        %2349 = vmatpush2.bf16.msra.mxu0 %v1781
        %2350 = vmatprep.subr.bf16.mxu0 %v1780
        %2351 = vmatpush2.bf16.msra.mxu0 %v1779
        %2352 = vmatprep.mubr.bf16.mxu0 %v814
        %2353 = vmatmul.mubr.bf16.gmra.mxu0 %v813
        %v2354 = vpop.f32.mrf.mxu0
        %v2355 = vadd.f32 %v2314, %v2354
        %v2356 = vpop.f32.mrf.mxu0
        %v2357 = vadd.f32 %v2316, %v2356
        %v2358 = vpop.f32.mrf.mxu0
        %v2359 = vpop.f32.mrf.mxu0
        %2360 = vdwg.mxu0
        %2361 = vmatprep.subr.bf16.mxu0 %v1810
        %2362 = vmatpush1.bf16.msra.mxu0 %v1809
        %2363 = vmatprep.subr.bf16.mxu0 %v1808
        %2364 = vmatpush1.bf16.msra.mxu0 %v1807
        %2365 = vmatprep.subr.bf16.mxu0 %v1806
        %2366 = vmatpush1.bf16.msra.mxu0 %v1805
        %2367 = vmatprep.subr.bf16.mxu0 %v1804
        %2368 = vmatpush1.bf16.msra.mxu0 %v1803
        %2369 = vmatprep.subr.bf16.mxu0 %v1802
        %2370 = vmatpush1.bf16.msra.mxu0 %v1801
        %2371 = vmatprep.subr.bf16.mxu0 %v1800
        %2372 = vmatpush1.bf16.msra.mxu0 %v1799
        %2373 = vmatprep.subr.bf16.mxu0 %v1798
        %2374 = vmatpush1.bf16.msra.mxu0 %v1797
        %2375 = vmatprep.subr.bf16.mxu0 %v1796
        %2376 = vmatpush1.bf16.msra.mxu0 %v1795
        %2377 = vmatprep.subr.bf16.mxu0 %v1826
        %2378 = vmatpush2.bf16.msra.mxu0 %v1825
        %2379 = vmatprep.subr.bf16.mxu0 %v1824
        %2380 = vmatpush2.bf16.msra.mxu0 %v1823
        %2381 = vmatprep.subr.bf16.mxu0 %v1822
        %2382 = vmatpush2.bf16.msra.mxu0 %v1821
        %2383 = vmatprep.subr.bf16.mxu0 %v1820
        %2384 = vmatpush2.bf16.msra.mxu0 %v1819
        %2385 = vmatprep.subr.bf16.mxu0 %v1818
        %2386 = vmatpush2.bf16.msra.mxu0 %v1817
        %2387 = vmatprep.subr.bf16.mxu0 %v1816
        %2388 = vmatpush2.bf16.msra.mxu0 %v1815
        %2389 = vmatprep.subr.bf16.mxu0 %v1814
        %2390 = vmatpush2.bf16.msra.mxu0 %v1813
        %2391 = vmatprep.subr.bf16.mxu0 %v1812
        %2392 = vmatpush2.bf16.msra.mxu0 %v1811
        %2393 = vmatprep.mubr.bf16.mxu0 %v816
        %2394 = vmatmul.mubr.bf16.gmra.mxu0 %v815
        %v2395 = vpop.f32.mrf.mxu0
        %v2396 = vadd.f32 %v2355, %v2395
        %v2397 = vpop.f32.mrf.mxu0
        %v2398 = vadd.f32 %v2357, %v2397
        %v2399 = vpop.f32.mrf.mxu0
        %v2400 = vpop.f32.mrf.mxu0
        %2401 = vdwg.mxu0
        %2402 = vmatprep.subr.bf16.mxu0 %v1842
        %2403 = vmatpush1.bf16.msra.mxu0 %v1841
        %2404 = vmatprep.subr.bf16.mxu0 %v1840
        %2405 = vmatpush1.bf16.msra.mxu0 %v1839
        %2406 = vmatprep.subr.bf16.mxu0 %v1838
        %2407 = vmatpush1.bf16.msra.mxu0 %v1837
        %2408 = vmatprep.subr.bf16.mxu0 %v1836
        %2409 = vmatpush1.bf16.msra.mxu0 %v1835
        %2410 = vmatprep.subr.bf16.mxu0 %v1834
        %2411 = vmatpush1.bf16.msra.mxu0 %v1833
        %2412 = vmatprep.subr.bf16.mxu0 %v1832
        %2413 = vmatpush1.bf16.msra.mxu0 %v1831
        %2414 = vmatprep.subr.bf16.mxu0 %v1830
        %2415 = vmatpush1.bf16.msra.mxu0 %v1829
        %2416 = vmatprep.subr.bf16.mxu0 %v1828
        %2417 = vmatpush1.bf16.msra.mxu0 %v1827
        %2418 = vmatprep.subr.bf16.mxu0 %v1858
        %2419 = vmatpush2.bf16.msra.mxu0 %v1857
        %2420 = vmatprep.subr.bf16.mxu0 %v1856
        %2421 = vmatpush2.bf16.msra.mxu0 %v1855
        %2422 = vmatprep.subr.bf16.mxu0 %v1854
        %2423 = vmatpush2.bf16.msra.mxu0 %v1853
        %2424 = vmatprep.subr.bf16.mxu0 %v1852
        %2425 = vmatpush2.bf16.msra.mxu0 %v1851
        %2426 = vmatprep.subr.bf16.mxu0 %v1850
        %2427 = vmatpush2.bf16.msra.mxu0 %v1849
        %2428 = vmatprep.subr.bf16.mxu0 %v1848
        %2429 = vmatpush2.bf16.msra.mxu0 %v1847
        %2430 = vmatprep.subr.bf16.mxu0 %v1846
        %2431 = vmatpush2.bf16.msra.mxu0 %v1845
        %2432 = vmatprep.subr.bf16.mxu0 %v1844
        %2433 = vmatpush2.bf16.msra.mxu0 %v1843
        %2434 = vmatprep.mubr.bf16.mxu0 %v818
        %2435 = vmatmul.mubr.bf16.gmra.mxu0 %v817
        %v2436 = vpop.f32.mrf.mxu0
        %v2437 = vadd.f32 %v2396, %v2436
        %v2438 = vpop.f32.mrf.mxu0
        %v2439 = vadd.f32 %v2398, %v2438
        %v2440 = vpop.f32.mrf.mxu0
        %v2441 = vpop.f32.mrf.mxu0
        %2442 = vdwg.mxu0
        %v2443 = vmax.f32 %v2437, 0.0
        %v2444 = vmax.f32 %v2439, 0.0
        %v2445 = vld [vmem:[#allocation12] sm:$0xff]
        %v2446 = vld [vmem:[%s320] sm:$0xff]
        %v2447 = vld [vmem:[%s320 + $0x8] sm:$0xff]
        %v2448 = vld [vmem:[%s320 + $0x10] sm:$0xff]
        %v2449 = vld [vmem:[%s320 + $0x18] sm:$0xff]
        %v2450 = vld [vmem:[%s320 + $0x20] sm:$0xff]
        %v2451 = vld [vmem:[%s320 + $0x28] sm:$0xff]
        %v2452 = vld [vmem:[%s320 + $0x30] sm:$0xff]
        %v2453 = vld [vmem:[%s320 + $0x38] sm:$0xff]
        %v2454 = vld [vmem:[%s320 + $0x40] sm:$0xff]
        %v2455 = vld [vmem:[%s320 + $0x48] sm:$0xff]
        %v2456 = vld [vmem:[%s320 + $0x50] sm:$0xff]
        %v2457 = vld [vmem:[%s320 + $0x58] sm:$0xff]
        %v2458 = vld [vmem:[%s320 + $0x60] sm:$0xff]
        %v2459 = vld [vmem:[%s320 + $0x68] sm:$0xff]
        %v2460 = vld [vmem:[%s320 + $0x70] sm:$0xff]
        %v2461 = vld [vmem:[%s320 + $0x78] sm:$0xff]
        %v2462 = vld [vmem:[%s320 + $0x80] sm:$0xff]
        %v2463 = vld [vmem:[%s320 + $0x88] sm:$0xff]
        %v2464 = vld [vmem:[%s320 + $0x90] sm:$0xff]
        %v2465 = vld [vmem:[%s320 + $0x98] sm:$0xff]
        %v2466 = vld [vmem:[%s320 + $0xa0] sm:$0xff]
        %v2467 = vld [vmem:[%s320 + $0xa8] sm:$0xff]
        %v2468 = vld [vmem:[%s320 + $0xb0] sm:$0xff]
        %v2469 = vld [vmem:[%s320 + $0xb8] sm:$0xff]
        %v2470 = vld [vmem:[%s320 + $0xc0] sm:$0xff]
        %v2471 = vld [vmem:[%s320 + $0xc8] sm:$0xff]
        %v2472 = vld [vmem:[%s320 + $0xd0] sm:$0xff]
        %v2473 = vld [vmem:[%s320 + $0xd8] sm:$0xff]
        %v2474 = vld [vmem:[%s320 + $0xe0] sm:$0xff]
        %v2475 = vld [vmem:[%s320 + $0xe8] sm:$0xff]
        %v2476 = vld [vmem:[%s320 + $0xf0] sm:$0xff]
        %v2477 = vld [vmem:[%s320 + $0xf8] sm:$0xff]
        %2478 = vmatprep.subr.mxu0 0.0
        %2479 = vmatpush1.msra.mxu0 %v2461
        %2480 = vmatprep.subr.mxu0 0.0
        %2481 = vmatpush1.msra.mxu0 %v2460
        %2482 = vmatprep.subr.mxu0 0.0
        %2483 = vmatpush1.msra.mxu0 %v2459
        %2484 = vmatprep.subr.mxu0 0.0
        %2485 = vmatpush1.msra.mxu0 %v2458
        %2486 = vmatprep.subr.mxu0 0.0
        %2487 = vmatpush1.msra.mxu0 %v2457
        %2488 = vmatprep.subr.mxu0 0.0
        %2489 = vmatpush1.msra.mxu0 %v2456
        %2490 = vmatprep.subr.mxu0 0.0
        %2491 = vmatpush1.msra.mxu0 %v2455
        %2492 = vmatprep.subr.mxu0 0.0
        %2493 = vmatpush1.msra.mxu0 %v2454
        %2494 = vmatprep.subr.mxu0 0.0
        %2495 = vmatpush1.msra.mxu0 %v2453
        %2496 = vmatprep.subr.mxu0 0.0
        %2497 = vmatpush1.msra.mxu0 %v2452
        %2498 = vmatprep.subr.mxu0 0.0
        %2499 = vmatpush1.msra.mxu0 %v2451
        %2500 = vmatprep.subr.mxu0 0.0
        %2501 = vmatpush1.msra.mxu0 %v2450
        %2502 = vmatprep.subr.mxu0 0.0
        %2503 = vmatpush1.msra.mxu0 %v2449
        %2504 = vmatprep.subr.mxu0 0.0
        %2505 = vmatpush1.msra.mxu0 %v2448
        %2506 = vmatprep.subr.mxu0 0.0
        %2507 = vmatpush1.msra.mxu0 %v2447
        %2508 = vmatprep.subr.mxu0 0.0
        %2509 = vmatpush1.msra.mxu0 %v2446
        %2510 = vmatprep.subr.mxu0 0.0
        %2511 = vmatpush2.msra.mxu0 %v2477
        %2512 = vmatprep.subr.mxu0 0.0
        %2513 = vmatpush2.msra.mxu0 %v2476
        %2514 = vmatprep.subr.mxu0 0.0
        %2515 = vmatpush2.msra.mxu0 %v2475
        %2516 = vmatprep.subr.mxu0 0.0
        %2517 = vmatpush2.msra.mxu0 %v2474
        %2518 = vmatprep.subr.mxu0 0.0
        %2519 = vmatpush2.msra.mxu0 %v2473
        %2520 = vmatprep.subr.mxu0 0.0
        %2521 = vmatpush2.msra.mxu0 %v2472
        %2522 = vmatprep.subr.mxu0 0.0
        %2523 = vmatpush2.msra.mxu0 %v2471
        %2524 = vmatprep.subr.mxu0 0.0
        %2525 = vmatpush2.msra.mxu0 %v2470
        %2526 = vmatprep.subr.mxu0 0.0
        %2527 = vmatpush2.msra.mxu0 %v2469
        %2528 = vmatprep.subr.mxu0 0.0
        %2529 = vmatpush2.msra.mxu0 %v2468
        %2530 = vmatprep.subr.mxu0 0.0
        %2531 = vmatpush2.msra.mxu0 %v2467
        %2532 = vmatprep.subr.mxu0 0.0
        %2533 = vmatpush2.msra.mxu0 %v2466
        %2534 = vmatprep.subr.mxu0 0.0
        %2535 = vmatpush2.msra.mxu0 %v2465
        %2536 = vmatprep.subr.mxu0 0.0
        %2537 = vmatpush2.msra.mxu0 %v2464
        %2538 = vmatprep.subr.mxu0 0.0
        %2539 = vmatpush2.msra.mxu0 %v2463
        %2540 = vmatprep.subr.mxu0 0.0
        %2541 = vmatpush2.msra.mxu0 %v2462
        %2542 = vmatprep.mubr.f32.mxu0 %v2444
        %2543 = vmatmul.mubr.f32.gmra.mxu0 %v2443
        %v2544 = vpop.f32.mrf.mxu0
        %v2545 = vadd.f32 0.0, %v2544
        %v2546 = vpop.f32.mrf.mxu0
        %2547 = vdwg.mxu0
        %v2548 = vadd.f32 %v2445, %v2545
        %2549 = vst [vmem:[#allocation12] sm:$0xff] %v2548
        %p2550 = scmp.eq.s32.totalorder %s29, 3
        // Predicated region
        $region65: #{tpu_custom_call.1} parent=39 // pred_check
          %p2551 = pneg %p2550
        $region66: #{tpu_custom_call.1} parent=39 // pred_check_branch
          %2553 = sbr.rel (%p2551) target = $region68
        $region67: #{tpu_custom_call.1} parent=39 // pred_region
          %v2554 = vld [vmem:[#allocation12] sm:$0xff]
          %v2555 = vld [vmem:[#allocation11] sm:$0x1]
          %v2557 = vlaneseq
          %v2558 = vshrl.u32 %v2557, 7
          %v2559 = vsub.s32 0, %v2558
          %v2560 = vrot.slane %v2555, %v2559
          %v2562 = vadd.f32 %v2554, %v2560
          %2563 = vst [vmem:[#allocation12] sm:$0xff] %v2562
        $region68: #{tpu_custom_call.1} parent=39 // pred_fallthru
          _
        // Predicated region
        $region69: #{tpu_custom_call.1} parent=39 // pred_check
          %p2564 = pneg %p179
        $region70: #{tpu_custom_call.1} parent=39 // pred_check_branch
          %2566 = sbr.rel (%p2564) target = $region72
        $region71: #{tpu_custom_call.1} parent=39 // pred_region
          %s2568 = ssub.s32 128, 128
          %2569 = vsyncadd [#allocation5], %s2568
          %s2570 = smul.addr %s28, 128
          %s2571 = scalar_lea.hbm %s5, %s2570
          %s2573 = sshll.u32 [#allocation12], 4
          %s2574 = int_to_ptr.vmem [resolvable:$true] %s2573
          %2576 = dma.vmem_to_hbm [thread:$0]  %s2574, 128, %s2571, [#allocation5]
        $region72: #{tpu_custom_call.1} parent=39 // pred_fallthru
          _
        // Predicated region
        $region73: #{tpu_custom_call.1} parent=39 // pred_check
          %p2577 = pneg %p179
        $region74: #{tpu_custom_call.1} parent=39 // pred_check_branch
          %2579 = sbr.rel (%p2577) target = $region76
        $region75: #{tpu_custom_call.1} parent=39 // pred_region
          %2580 = dma.done [#allocation5], 128
        $region76: #{tpu_custom_call.1} parent=39 // pred_fallthru
          _
      $region40: #{tpu_custom_call.1} parent=5 // pred_fallthru
        _
      %p2581 = scmp.le.s32.totalorder 2, %s19
      // Predicated region
      $region77: #{tpu_custom_call.1} parent=5 // pred_check
        %p2582 = pneg %p2581
      $region78: #{tpu_custom_call.1} parent=5 // pred_check_branch
        %2584 = sbr.rel (%p2582) target = $region80
      $region79: #{tpu_custom_call.1} parent=5 // pred_region
        %s2585 = ssub.s32 %s19, 2
      $region80: #{tpu_custom_call.1} parent=5 // pred_fallthru
        _
    $region6: #{tpu_custom_call.1} parent=1 // loop_footer
      %s23 = sadd.s32 1, %s19
    $region7: #{tpu_custom_call.1} parent=1 // loop_footer_branch
      %18 = sbr.rel target = $region3
    $region8: #{tpu_custom_call.1} parent=1 // loop_exit
      _
    %2586 = vsyncpa [#allocation4], 1
    %s2587 = scalar_lea.sflag [#allocation4], 1
    %2588 = vsyncpa %s2587, 1
    %2589 = vsyncpa [#allocation7], 1
    %s2590 = scalar_lea.sflag [#allocation7], 1
    %2591 = vsyncpa %s2590, 1
    %2592 = vsyncpa [#allocation10], 1
    %s2593 = scalar_lea.sflag [#allocation10], 1
    %2594 = vsyncpa %s2593, 1
    %2595 = vsyncpa [#allocation5], 1
    %s2596 = scalar_lea.sflag [#allocation5], 1
    %2597 = vsyncpa %s2596, 1

</llo_original>
